<compile_context>
chip_gen: v6e
topology: v6e:2x2x1
jax: 0.10.0
libtpu: 0.0.40
codegen_flags: <defaults>
</compile_context>

<pallas_src>
import functools

import jax
import jax.numpy as jnp
from jax.experimental import pallas as pl
from jax.experimental.pallas import tpu as pltpu

K_IN = 28 * 28   # 784 (multiple of 8 sublanes; kept un-padded, full-dim block)
H = 512
N_OUT = 10
N_PAD = 128      # lane-dense padded logits width


def _round_up(x, m):
    return (x + m - 1) // m * m


def mlp_kernel(x_ref, w1_ref, b1_ref, w2_ref, b2_ref, w3_ref, b3_ref, o_ref):
    # x: (TILE_B, 784) bf16; w1: (784, 512) bf16; w2: (512, 512) bf16;
    # w3: (512, 128) bf16; biases f32 (1, ...). All dots accumulate in f32 on
    # the MXU; bias-add/ReLU stay in f32 (no bf16 VALU on v5e) and only the
    # operand for the next dot is packed to bf16.
    h1 = jnp.dot(x_ref[...], w1_ref[...], preferred_element_type=jnp.float32)
    h1 = jnp.maximum(h1 + b1_ref[...], 0.0).astype(jnp.bfloat16)
    h2 = jnp.dot(h1, w2_ref[...], preferred_element_type=jnp.float32)
    h2 = jnp.maximum(h2 + b2_ref[...], 0.0).astype(jnp.bfloat16)
    h3 = jnp.dot(h2, w3_ref[...], preferred_element_type=jnp.float32)
    # Trailing ReLU is intentional: the module's Sequential ends with nn.ReLU().
    o_ref[...] = jnp.maximum(h3 + b3_ref[...], 0.0)


def prepare_params(params):
    """Cast the f32 (in, out)-layout params to the kernel layout (bf16 weights)."""
    w1, b1, w2, b2, w3, b3 = params
    w1p = w1.astype(jnp.bfloat16)                                         # (784, 512)
    w2p = w2.astype(jnp.bfloat16)                                         # (512, 512)
    w3p = jnp.pad(w3, ((0, 0), (0, N_PAD - N_OUT))).astype(jnp.bfloat16)  # (512, 128)
    b1p = b1.astype(jnp.float32)                                          # (1, 512)
    b2p = b2.astype(jnp.float32)                                          # (1, 512)
    b3p = jnp.pad(b3, ((0, 0), (0, N_PAD - N_OUT))).astype(jnp.float32)   # (1, 128)
    return w1p, b1p, w2p, b2p, w3p, b3p


@functools.partial(jax.jit, static_argnames=("tile_b",))
def neural_network_forward(x_nchw, params, tile_b=1024):
    """x_nchw: (B, 1, 28, 28) float32. Returns (B, 10) float32."""
    B = x_nchw.shape[0]
    # Single fused wrapper pass over x: reshape + bf16 cast (no K padding).
    x_flat = x_nchw.reshape(B, K_IN).astype(jnp.bfloat16)

    # Batch tile: multiple of 16 (bf16 sublane packing), capped at the (rounded)
    # batch so tiny batches don't over-allocate.
    b16 = _round_up(B, 16)
    tile_b = min(tile_b, b16)
    # v7x has 2 TensorCores; with a "parallel" batch axis, give the grid >= 2
    # steps when the batch is big enough that a half-size tile (>= 512 rows)
    # still amortizes the ~0.35 us per-grid-step overhead. No effect on v5e/v6e.
    two_step_tile = _round_up(pl.cdiv(b16, 2), 16)
    if two_step_tile >= 512:
        tile_b = min(tile_b, two_step_tile)

    b_pad = _round_up(B, tile_b)
    if b_pad != B:
        x_flat = jnp.pad(x_flat, ((0, b_pad - B), (0, 0)))

    w1, b1, w2, b2, w3, b3 = prepare_params(params)
    grid = (b_pad // tile_b,)

    def resident(shape):
        # Weights/biases: same block every grid step -> DMA'd once, stay in VMEM.
        return pl.BlockSpec(shape, lambda i: (0, 0))

    cost = pl.CostEstimate(
        flops=2 * b_pad * (K_IN * H + H * H + H * N_PAD),
        transcendentals=0,
        bytes_accessed=(x_flat.size * 2
                        + (w1.size + w2.size + w3.size) * 2
                        + (b1.size + b2.size + b3.size) * 4
                        + b_pad * N_PAD * 4),
    )

    out = pl.pallas_call(
        mlp_kernel,
        out_shape=jax.ShapeDtypeStruct((b_pad, N_PAD), jnp.float32),
        grid=grid,
        in_specs=[
            pl.BlockSpec((tile_b, K_IN), lambda i: (i, 0)),  # x tile streams per step
            resident((K_IN, H)),
            resident((1, H)),
            resident((H, H)),
            resident((1, H)),
            resident((H, N_PAD)),
            resident((1, N_PAD)),
        ],
        out_specs=pl.BlockSpec((tile_b, N_PAD), lambda i: (i, 0)),
        compiler_params=pltpu.CompilerParams(
            # Shards batch tiles across TensorCores on v7x.
            dimension_semantics=("parallel",),
            # Explicit limit so tile_b >= 1024 never trips the default scoped
            # VMEM limit (16 MiB v5e / 32 MiB v6e,v7x); actual use is ~10-15 MiB.
            vmem_limit_bytes=48 * 1024 * 1024,
        ),
        cost_estimate=cost,
    )(x_flat, w1, b1, w2, b2, w3, b3)

    return out[:B, :N_OUT]


def init_params(key):
    """Deterministic init mirroring nn.Linear shapes (stored transposed: (in, out))."""
    k1, k2, k3, k4, k5, k6 = jax.random.split(key, 6)

    def linear(kw, kb, fan_in, fan_out):
        bound = 1.0 / jnp.sqrt(fan_in)
        w = jax.random.uniform(kw, (fan_in, fan_out), jnp.float32, -bound, bound)
        b = jax.random.uniform(kb, (1, fan_out), jnp.float32, -bound, bound)
        return w, b

    w1, b1 = linear(k1, k2, K_IN, H)
    w2, b2 = linear(k3, k4, H, H)
    w3, b3 = linear(k5, k6, H, N_OUT)
    return (w1, b1, w2, b2, w3, b3)


def reference_forward_f32(x_nchw, params):
    """Full-precision reference matching the PyTorch module semantics."""
    w1, b1, w2, b2, w3, b3 = params
    x = x_nchw.reshape(x_nchw.shape[0], -1)
    h = jnp.maximum(x @ w1 + b1, 0.0)
    h = jnp.maximum(h @ w2 + b2, 0.0)
    return jnp.maximum(h @ w3 + b3, 0.0)


def reference_forward_bf16(x_nchw, params):
    """Mirrors the kernel's bf16-input / f32-accumulate numerics in plain JAX."""
    w1, b1, w2, b2, w3, b3 = params
    x = x_nchw.reshape(x_nchw.shape[0], -1).astype(jnp.bfloat16)
    h = jnp.dot(x, w1.astype(jnp.bfloat16), preferred_element_type=jnp.float32) + b1
    h = jnp.maximum(h, 0.0).astype(jnp.bfloat16)
    h = jnp.dot(h, w2.astype(jnp.bfloat16), preferred_element_type=jnp.float32) + b2
    h = jnp.maximum(h, 0.0).astype(jnp.bfloat16)
    h = jnp.dot(h, w3.astype(jnp.bfloat16), preferred_element_type=jnp.float32) + b3
    return jnp.maximum(h, 0.0)


if __name__ == "__main__":
    key = jax.random.PRNGKey(0)
    kx, kp = jax.random.split(key)
    B = 2
    x = jax.random.normal(kx, (B, 1, 28, 28), jnp.float32)
    params = init_params(kp)

    out = jax.block_until_ready(neural_network_forward(x, params))
    assert out.shape == (B, N_OUT)
    assert out.dtype == jnp.float32

    # Tight check vs. a reference with the same bf16-in / f32-accumulate numerics.
    ref_q = reference_forward_bf16(x, params)
    assert jnp.allclose(out, ref_q, atol=1e-2, rtol=1e-2), "mismatch vs bf16 reference"

    # Looser semantic check vs. the full-f32 PyTorch-equivalent forward.
    # (bf16 inputs/weights with f32 accumulation is an explicit inference-numerics choice.)
    ref = reference_forward_f32(x, params)
    assert jnp.allclose(out, ref, atol=1e-1, rtol=5e-2), "mismatch vs f32 reference"

    # Exercise a multi-step grid (>= 2 tiles) to cover the streaming/megacore path.
    B2 = 2048
    x2 = jax.random.normal(kx, (B2, 1, 28, 28), jnp.float32)
    out2 = jax.block_until_ready(neural_network_forward(x2, params))
    ref2 = reference_forward_bf16(x2, params)
    assert out2.shape == (B2, N_OUT)
    assert jnp.allclose(out2, ref2, atol=1e-2, rtol=1e-2), "mismatch (large batch)"

    print("KERNEL_OK")
</pallas_src>

<mosaic_0001>
module attributes {stable_mosaic.version = 11 : i64} {
  func.func @mlp_kernel(%arg0: i32, %arg1: memref<16x784xbf16, #tpu.memory_space<vmem>>, %arg2: memref<784x512xbf16, #tpu.memory_space<vmem>>, %arg3: memref<1x512xf32, #tpu.memory_space<vmem>>, %arg4: memref<512x512xbf16, #tpu.memory_space<vmem>>, %arg5: memref<1x512xf32, #tpu.memory_space<vmem>>, %arg6: memref<512x128xbf16, #tpu.memory_space<vmem>>, %arg7: memref<1x128xf32, #tpu.memory_space<vmem>>, %arg8: memref<16x128xf32, #tpu.memory_space<vmem>>) attributes {dimension_semantics = [#tpu.dimension_semantics<parallel>], iteration_bounds = array<i64: 1>, scalar_prefetch = 0 : i64, scratch_operands = 0 : i64, tpu.core_type = #tpu.core_type<tc>, window_params = [{transform_indices = @transform_0, window_bounds = array<i64: 16, 784>}, {pipeline_mode = #tpu.pipeline_mode<synchronous>, transform_indices = @transform_1, window_bounds = array<i64: 784, 512>}, {pipeline_mode = #tpu.pipeline_mode<synchronous>, transform_indices = @transform_2, window_bounds = array<i64: 1, 512>}, {pipeline_mode = #tpu.pipeline_mode<synchronous>, transform_indices = @transform_3, window_bounds = array<i64: 512, 512>}, {pipeline_mode = #tpu.pipeline_mode<synchronous>, transform_indices = @transform_4, window_bounds = array<i64: 1, 512>}, {pipeline_mode = #tpu.pipeline_mode<synchronous>, transform_indices = @transform_5, window_bounds = array<i64: 512, 128>}, {pipeline_mode = #tpu.pipeline_mode<synchronous>, transform_indices = @transform_6, window_bounds = array<i64: 1, 128>}, {transform_indices = @transform_7, window_bounds = array<i64: 16, 128>}]} {
    %c0 = arith.constant 0 : index
    %c0_0 = arith.constant 0 : index
    %0 = vector.load %arg1[%c0, %c0_0] : memref<16x784xbf16, #tpu.memory_space<vmem>>, vector<16x784xbf16>
    %c0_1 = arith.constant 0 : index
    %c0_2 = arith.constant 0 : index
    %1 = vector.load %arg2[%c0_1, %c0_2] : memref<784x512xbf16, #tpu.memory_space<vmem>>, vector<784x512xbf16>
    %cst = arith.constant dense<0.000000e+00> : vector<16x512xf32>
    %2 = tpu.matmul %0, %1, %cst {dimension_numbers = #tpu.dot_dimension_numbers<[1], [0], [0], [1], [0, 0, 1, 1], [], []>} : vector<16x784xbf16>, vector<784x512xbf16>, vector<16x512xf32> -> vector<16x512xf32>
    %c0_3 = arith.constant 0 : index
    %c0_4 = arith.constant 0 : index
    %3 = vector.load %arg3[%c0_3, %c0_4] : memref<1x512xf32, #tpu.memory_space<vmem>>, vector<1x512xf32>
    %4 = vector.broadcast %3 : vector<1x512xf32> to vector<16x512xf32>
    %5 = arith.addf %2, %4 : vector<16x512xf32>
    %cst_5 = arith.constant 0.000000e+00 : f32
    %6 = vector.broadcast %cst_5 : f32 to vector<16x512xf32>
    %7 = arith.maximumf %5, %6 : vector<16x512xf32>
    %8 = arith.truncf %7 : vector<16x512xf32> to vector<16x512xbf16>
    %c0_6 = arith.constant 0 : index
    %c0_7 = arith.constant 0 : index
    %9 = vector.load %arg4[%c0_6, %c0_7] : memref<512x512xbf16, #tpu.memory_space<vmem>>, vector<512x512xbf16>
    %cst_8 = arith.constant dense<0.000000e+00> : vector<16x512xf32>
    %10 = tpu.matmul %8, %9, %cst_8 {dimension_numbers = #tpu.dot_dimension_numbers<[1], [0], [0], [1], [0, 0, 1, 1], [], []>} : vector<16x512xbf16>, vector<512x512xbf16>, vector<16x512xf32> -> vector<16x512xf32>
    %c0_9 = arith.constant 0 : index
    %c0_10 = arith.constant 0 : index
    %11 = vector.load %arg5[%c0_9, %c0_10] : memref<1x512xf32, #tpu.memory_space<vmem>>, vector<1x512xf32>
    %12 = vector.broadcast %11 : vector<1x512xf32> to vector<16x512xf32>
    %13 = arith.addf %10, %12 : vector<16x512xf32>
    %cst_11 = arith.constant 0.000000e+00 : f32
    %14 = vector.broadcast %cst_11 : f32 to vector<16x512xf32>
    %15 = arith.maximumf %13, %14 : vector<16x512xf32>
    %16 = arith.truncf %15 : vector<16x512xf32> to vector<16x512xbf16>
    %c0_12 = arith.constant 0 : index
    %c0_13 = arith.constant 0 : index
    %17 = vector.load %arg6[%c0_12, %c0_13] : memref<512x128xbf16, #tpu.memory_space<vmem>>, vector<512x128xbf16>
    %cst_14 = arith.constant dense<0.000000e+00> : vector<16x128xf32>
    %18 = tpu.matmul %16, %17, %cst_14 {dimension_numbers = #tpu.dot_dimension_numbers<[1], [0], [0], [1], [0, 0, 1, 1], [], []>} : vector<16x512xbf16>, vector<512x128xbf16>, vector<16x128xf32> -> vector<16x128xf32>
    %c0_15 = arith.constant 0 : index
    %c0_16 = arith.constant 0 : index
    %19 = vector.load %arg7[%c0_15, %c0_16] : memref<1x128xf32, #tpu.memory_space<vmem>>, vector<1x128xf32>
    %20 = vector.broadcast %19 : vector<1x128xf32> to vector<16x128xf32>
    %21 = arith.addf %18, %20 : vector<16x128xf32>
    %cst_17 = arith.constant 0.000000e+00 : f32
    %22 = vector.broadcast %cst_17 : f32 to vector<16x128xf32>
    %23 = arith.maximumf %21, %22 : vector<16x128xf32>
    %c0_18 = arith.constant 0 : index
    %c0_19 = arith.constant 0 : index
    %24 = vector.load %arg8[%c0_18, %c0_19] : memref<16x128xf32, #tpu.memory_space<vmem>>, vector<16x128xf32>
    tpu.vector_store %arg8[%c0_18, %c0_19], %23 {strides = array<i32>} : memref<16x128xf32, #tpu.memory_space<vmem>>, vector<16x128xf32>,
    return
  }
  func.func @transform_0(%arg0: i32) -> (i32, i32) {
    %c0_i32 = arith.constant 0 : i32
    %c0_i32_0 = arith.constant 0 : i32
    return %arg0, %c0_i32 : i32, i32
  }
  func.func @transform_1(%arg0: i32) -> (i32, i32) {
    %c0_i32 = arith.constant 0 : i32
    %c0_i32_0 = arith.constant 0 : i32
    %c0_i32_1 = arith.constant 0 : i32
    return %c0_i32, %c0_i32_0 : i32, i32
  }
  func.func @transform_2(%arg0: i32) -> (i32, i32) {
    %c0_i32 = arith.constant 0 : i32
    %c0_i32_0 = arith.constant 0 : i32
    %c0_i32_1 = arith.constant 0 : i32
    return %c0_i32, %c0_i32_0 : i32, i32
  }
  func.func @transform_3(%arg0: i32) -> (i32, i32) {
    %c0_i32 = arith.constant 0 : i32
    %c0_i32_0 = arith.constant 0 : i32
    %c0_i32_1 = arith.constant 0 : i32
    return %c0_i32, %c0_i32_0 : i32, i32
  }
  func.func @transform_4(%arg0: i32) -> (i32, i32) {
    %c0_i32 = arith.constant 0 : i32
    %c0_i32_0 = arith.constant 0 : i32
    %c0_i32_1 = arith.constant 0 : i32
    return %c0_i32, %c0_i32_0 : i32, i32
  }
  func.func @transform_5(%arg0: i32) -> (i32, i32) {
    %c0_i32 = arith.constant 0 : i32
    %c0_i32_0 = arith.constant 0 : i32
    %c0_i32_1 = arith.constant 0 : i32
    return %c0_i32, %c0_i32_0 : i32, i32
  }
  func.func @transform_6(%arg0: i32) -> (i32, i32) {
    %c0_i32 = arith.constant 0 : i32
    %c0_i32_0 = arith.constant 0 : i32
    %c0_i32_1 = arith.constant 0 : i32
    return %c0_i32, %c0_i32_0 : i32, i32
  }
  func.func @transform_7(%arg0: i32) -> (i32, i32) {
    %c0_i32 = arith.constant 0 : i32
    %c0_i32_0 = arith.constant 0 : i32
    return %arg0, %c0_i32 : i32, i32
  }
}

</mosaic_0001>

<llo_original>
// kernel: neural_network_forward.1
$region0: #{neural_network_forward.1}
  #allocation0 [shape = 'u32[]', space=smem, size = 0x4, offset = 0x4, fixed_abs, tag = 'smem constant byte address 0x4 - core index']
  #allocation1 [shape = 'u32[144,128]{1,0:T(1,128)}', space=vmem, size = 0x12000, scoped, tag = 'internal scratch']
  %s0 = inlined_call_operand.vmem [shape: bf16[16,784], index: 0, kind: input, shape index: {}]
  %s1 = inlined_call_operand.vmem [shape: bf16[784,512], index: 1, kind: input, shape index: {}]
  %s2 = inlined_call_operand.vmem [shape: f32[1,512], index: 2, kind: input, shape index: {}]
  %s3 = inlined_call_operand.vmem [shape: bf16[512,512], index: 3, kind: input, shape index: {}]
  %s4 = inlined_call_operand.vmem [shape: f32[1,512], index: 4, kind: input, shape index: {}]
  %s5 = inlined_call_operand.vmem [shape: bf16[512,128], index: 5, kind: input, shape index: {}]
  %s6 = inlined_call_operand.vmem [shape: f32[1,128], index: 6, kind: input, shape index: {}]
  %s7 = inlined_call_operand.vmem [shape: f32[16,128], index: 7, kind: output, shape index: {}]
  %s8 = sld [smem:[#allocation0]]
  $region38: #{neural_network_forward.1} parent=0
    _
  %s10 = ssub.s32 1, %s8
  %s11 = scalar_select 0, %s10, %s8
  // Predicated region
  $region2: #{neural_network_forward.1} parent=0 // pred_check
    _
  $region3: #{neural_network_forward.1} parent=0 // pred_check_branch
    %13 = sbr.rel (0) target = $region5
  $region4: #{neural_network_forward.1} parent=0 // pred_region
    _
  $region5: #{neural_network_forward.1} parent=0 // pred_fallthru
    _
  // Predicated region
  $region6: #{neural_network_forward.1} parent=0 // pred_check
    _
  $region7: #{neural_network_forward.1} parent=0 // pred_check_branch
    %15 = sbr.rel (0) target = $region9
  $region8: #{neural_network_forward.1} parent=0 // pred_region
    _
  $region9: #{neural_network_forward.1} parent=0 // pred_fallthru
    _
  // Predicated region
  $region10: #{neural_network_forward.1} parent=0 // pred_check
    _
  $region11: #{neural_network_forward.1} parent=0 // pred_check_branch
    %17 = sbr.rel (0) target = $region13
  $region12: #{neural_network_forward.1} parent=0 // pred_region
    _
  $region13: #{neural_network_forward.1} parent=0 // pred_fallthru
    _
  // Predicated region
  $region14: #{neural_network_forward.1} parent=0 // pred_check
    _
  $region15: #{neural_network_forward.1} parent=0 // pred_check_branch
    %19 = sbr.rel (0) target = $region17
  $region16: #{neural_network_forward.1} parent=0 // pred_region
    _
  $region17: #{neural_network_forward.1} parent=0 // pred_fallthru
    _
  // Predicated region
  $region18: #{neural_network_forward.1} parent=0 // pred_check
    _
  $region19: #{neural_network_forward.1} parent=0 // pred_check_branch
    %21 = sbr.rel (0) target = $region21
  $region20: #{neural_network_forward.1} parent=0 // pred_region
    _
  $region21: #{neural_network_forward.1} parent=0 // pred_fallthru
    _
  // Predicated region
  $region22: #{neural_network_forward.1} parent=0 // pred_check
    _
  $region23: #{neural_network_forward.1} parent=0 // pred_check_branch
    %23 = sbr.rel (0) target = $region25
  $region24: #{neural_network_forward.1} parent=0 // pred_region
    _
  $region25: #{neural_network_forward.1} parent=0 // pred_fallthru
    _
  // Predicated region
  $region26: #{neural_network_forward.1} parent=0 // pred_check
    _
  $region27: #{neural_network_forward.1} parent=0 // pred_check_branch
    %25 = sbr.rel (0) target = $region29
  $region28: #{neural_network_forward.1} parent=0 // pred_region
    _
  $region29: #{neural_network_forward.1} parent=0 // pred_fallthru
    _
  %v27 = vld [vmem:[%s0] sm:$0xff]
  %v28 = vld [vmem:[%s0 + $0x8] sm:$0xff]
  %v29 = vld [vmem:[%s0 + $0x10] sm:$0xff]
  %v30 = vld [vmem:[%s0 + $0x18] sm:$0xf]
  %v31 = vld [vmem:[%s0 + $0x1c] sm:$0xff]
  %v32 = vld [vmem:[%s0 + $0x24] sm:$0xff]
  %v33 = vld [vmem:[%s0 + $0x2c] sm:$0xff]
  %v34 = vld [vmem:[%s0 + $0x34] sm:$0xf]
  %v35 = vld [vmem:[%s1] sm:$0xff]
  %v36 = vld [vmem:[%s1 + $0x8] sm:$0xff]
  %v37 = vld [vmem:[%s1 + $0x10] sm:$0xff]
  %v38 = vld [vmem:[%s1 + $0x18] sm:$0xff]
  %v39 = vld [vmem:[%s1 + $0x20] sm:$0xff]
  %v40 = vld [vmem:[%s1 + $0x28] sm:$0xff]
  %v41 = vld [vmem:[%s1 + $0x30] sm:$0xff]
  %v42 = vld [vmem:[%s1 + $0x38] sm:$0xff]
  %v43 = vld [vmem:[%s1 + $0x40] sm:$0xff]
  %v44 = vld [vmem:[%s1 + $0x48] sm:$0xff]
  %v45 = vld [vmem:[%s1 + $0x50] sm:$0xff]
  %v46 = vld [vmem:[%s1 + $0x58] sm:$0xff]
  %v47 = vld [vmem:[%s1 + $0x60] sm:$0xff]
  %v48 = vld [vmem:[%s1 + $0x68] sm:$0xff]
  %v49 = vld [vmem:[%s1 + $0x70] sm:$0xff]
  %v50 = vld [vmem:[%s1 + $0x78] sm:$0xff]
  %v51 = vld [vmem:[%s1 + $0x80] sm:$0xff]
  %v52 = vld [vmem:[%s1 + $0x88] sm:$0xff]
  %v53 = vld [vmem:[%s1 + $0x90] sm:$0xff]
  %v54 = vld [vmem:[%s1 + $0x98] sm:$0xff]
  %v55 = vld [vmem:[%s1 + $0xa0] sm:$0xff]
  %v56 = vld [vmem:[%s1 + $0xa8] sm:$0xff]
  %v57 = vld [vmem:[%s1 + $0xb0] sm:$0xff]
  %v58 = vld [vmem:[%s1 + $0xb8] sm:$0xff]
  %v59 = vld [vmem:[%s1 + $0xc0] sm:$0xff]
  %v60 = vld [vmem:[%s1 + $0xc8] sm:$0xff]
  %v61 = vld [vmem:[%s1 + $0xd0] sm:$0xff]
  %v62 = vld [vmem:[%s1 + $0xd8] sm:$0xff]
  %v63 = vld [vmem:[%s1 + $0xe0] sm:$0xff]
  %v64 = vld [vmem:[%s1 + $0xe8] sm:$0xff]
  %v65 = vld [vmem:[%s1 + $0xf0] sm:$0xff]
  %v66 = vld [vmem:[%s1 + $0xf8] sm:$0xff]
  %v67 = vld [vmem:[%s1 + $0x100] sm:$0xff]
  %v68 = vld [vmem:[%s1 + $0x108] sm:$0xff]
  %v69 = vld [vmem:[%s1 + $0x110] sm:$0xff]
  %v70 = vld [vmem:[%s1 + $0x118] sm:$0xff]
  %v71 = vld [vmem:[%s1 + $0x120] sm:$0xff]
  %v72 = vld [vmem:[%s1 + $0x128] sm:$0xff]
  %v73 = vld [vmem:[%s1 + $0x130] sm:$0xff]
  %v74 = vld [vmem:[%s1 + $0x138] sm:$0xff]
  %v75 = vld [vmem:[%s1 + $0x140] sm:$0xff]
  %v76 = vld [vmem:[%s1 + $0x148] sm:$0xff]
  %v77 = vld [vmem:[%s1 + $0x150] sm:$0xff]
  %v78 = vld [vmem:[%s1 + $0x158] sm:$0xff]
  %v79 = vld [vmem:[%s1 + $0x160] sm:$0xff]
  %v80 = vld [vmem:[%s1 + $0x168] sm:$0xff]
  %v81 = vld [vmem:[%s1 + $0x170] sm:$0xff]
  %v82 = vld [vmem:[%s1 + $0x178] sm:$0xff]
  %v83 = vld [vmem:[%s1 + $0x180] sm:$0xff]
  %v84 = vld [vmem:[%s1 + $0x188] sm:$0xff]
  %v85 = vld [vmem:[%s1 + $0x190] sm:$0xff]
  %v86 = vld [vmem:[%s1 + $0x198] sm:$0xff]
  %v87 = vld [vmem:[%s1 + $0x1a0] sm:$0xff]
  %v88 = vld [vmem:[%s1 + $0x1a8] sm:$0xff]
  %v89 = vld [vmem:[%s1 + $0x1b0] sm:$0xff]
  %v90 = vld [vmem:[%s1 + $0x1b8] sm:$0xff]
  %v91 = vld [vmem:[%s1 + $0x1c0] sm:$0xff]
  %v92 = vld [vmem:[%s1 + $0x1c8] sm:$0xff]
  %v93 = vld [vmem:[%s1 + $0x1d0] sm:$0xff]
  %v94 = vld [vmem:[%s1 + $0x1d8] sm:$0xff]
  %v95 = vld [vmem:[%s1 + $0x1e0] sm:$0xff]
  %v96 = vld [vmem:[%s1 + $0x1e8] sm:$0xff]
  %v97 = vld [vmem:[%s1 + $0x1f0] sm:$0xff]
  %v98 = vld [vmem:[%s1 + $0x1f8] sm:$0xff]
  %v99 = vld [vmem:[%s1 + $0x200] sm:$0xff]
  %v100 = vld [vmem:[%s1 + $0x208] sm:$0xff]
  %v101 = vld [vmem:[%s1 + $0x210] sm:$0xff]
  %v102 = vld [vmem:[%s1 + $0x218] sm:$0xff]
  %v103 = vld [vmem:[%s1 + $0x220] sm:$0xff]
  %v104 = vld [vmem:[%s1 + $0x228] sm:$0xff]
  %v105 = vld [vmem:[%s1 + $0x230] sm:$0xff]
  %v106 = vld [vmem:[%s1 + $0x238] sm:$0xff]
  %v107 = vld [vmem:[%s1 + $0x240] sm:$0xff]
  %v108 = vld [vmem:[%s1 + $0x248] sm:$0xff]
  %v109 = vld [vmem:[%s1 + $0x250] sm:$0xff]
  %v110 = vld [vmem:[%s1 + $0x258] sm:$0xff]
  %v111 = vld [vmem:[%s1 + $0x260] sm:$0xff]
  %v112 = vld [vmem:[%s1 + $0x268] sm:$0xff]
  %v113 = vld [vmem:[%s1 + $0x270] sm:$0xff]
  %v114 = vld [vmem:[%s1 + $0x278] sm:$0xff]
  %v115 = vld [vmem:[%s1 + $0x280] sm:$0xff]
  %v116 = vld [vmem:[%s1 + $0x288] sm:$0xff]
  %v117 = vld [vmem:[%s1 + $0x290] sm:$0xff]
  %v118 = vld [vmem:[%s1 + $0x298] sm:$0xff]
  %v119 = vld [vmem:[%s1 + $0x2a0] sm:$0xff]
  %v120 = vld [vmem:[%s1 + $0x2a8] sm:$0xff]
  %v121 = vld [vmem:[%s1 + $0x2b0] sm:$0xff]
  %v122 = vld [vmem:[%s1 + $0x2b8] sm:$0xff]
  %v123 = vld [vmem:[%s1 + $0x2c0] sm:$0xff]
  %v124 = vld [vmem:[%s1 + $0x2c8] sm:$0xff]
  %v125 = vld [vmem:[%s1 + $0x2d0] sm:$0xff]
  %v126 = vld [vmem:[%s1 + $0x2d8] sm:$0xff]
  %v127 = vld [vmem:[%s1 + $0x2e0] sm:$0xff]
  %v128 = vld [vmem:[%s1 + $0x2e8] sm:$0xff]
  %v129 = vld [vmem:[%s1 + $0x2f0] sm:$0xff]
  %v130 = vld [vmem:[%s1 + $0x2f8] sm:$0xff]
  %v131 = vld [vmem:[%s1 + $0x300] sm:$0xff]
  %v132 = vld [vmem:[%s1 + $0x308] sm:$0xff]
  %v133 = vld [vmem:[%s1 + $0x310] sm:$0xff]
  %v134 = vld [vmem:[%s1 + $0x318] sm:$0xff]
  %v135 = vld [vmem:[%s1 + $0x320] sm:$0xff]
  %v136 = vld [vmem:[%s1 + $0x328] sm:$0xff]
  %v137 = vld [vmem:[%s1 + $0x330] sm:$0xff]
  %v138 = vld [vmem:[%s1 + $0x338] sm:$0xff]
  %v139 = vld [vmem:[%s1 + $0x340] sm:$0xff]
  %v140 = vld [vmem:[%s1 + $0x348] sm:$0xff]
  %v141 = vld [vmem:[%s1 + $0x350] sm:$0xff]
  %v142 = vld [vmem:[%s1 + $0x358] sm:$0xff]
  %v143 = vld [vmem:[%s1 + $0x360] sm:$0xff]
  %v144 = vld [vmem:[%s1 + $0x368] sm:$0xff]
  %v145 = vld [vmem:[%s1 + $0x370] sm:$0xff]
  %v146 = vld [vmem:[%s1 + $0x378] sm:$0xff]
  %v147 = vld [vmem:[%s1 + $0x380] sm:$0xff]
  %v148 = vld [vmem:[%s1 + $0x388] sm:$0xff]
  %v149 = vld [vmem:[%s1 + $0x390] sm:$0xff]
  %v150 = vld [vmem:[%s1 + $0x398] sm:$0xff]
  %v151 = vld [vmem:[%s1 + $0x3a0] sm:$0xff]
  %v152 = vld [vmem:[%s1 + $0x3a8] sm:$0xff]
  %v153 = vld [vmem:[%s1 + $0x3b0] sm:$0xff]
  %v154 = vld [vmem:[%s1 + $0x3b8] sm:$0xff]
  %v155 = vld [vmem:[%s1 + $0x3c0] sm:$0xff]
  %v156 = vld [vmem:[%s1 + $0x3c8] sm:$0xff]
  %v157 = vld [vmem:[%s1 + $0x3d0] sm:$0xff]
  %v158 = vld [vmem:[%s1 + $0x3d8] sm:$0xff]
  %v159 = vld [vmem:[%s1 + $0x3e0] sm:$0xff]
  %v160 = vld [vmem:[%s1 + $0x3e8] sm:$0xff]
  %v161 = vld [vmem:[%s1 + $0x3f0] sm:$0xff]
  %v162 = vld [vmem:[%s1 + $0x3f8] sm:$0xff]
  %v163 = vld [vmem:[%s1 + $0x400] sm:$0xff]
  %v164 = vld [vmem:[%s1 + $0x408] sm:$0xff]
  %v165 = vld [vmem:[%s1 + $0x410] sm:$0xff]
  %v166 = vld [vmem:[%s1 + $0x418] sm:$0xff]
  %v167 = vld [vmem:[%s1 + $0x420] sm:$0xff]
  %v168 = vld [vmem:[%s1 + $0x428] sm:$0xff]
  %v169 = vld [vmem:[%s1 + $0x430] sm:$0xff]
  %v170 = vld [vmem:[%s1 + $0x438] sm:$0xff]
  %v171 = vld [vmem:[%s1 + $0x440] sm:$0xff]
  %v172 = vld [vmem:[%s1 + $0x448] sm:$0xff]
  %v173 = vld [vmem:[%s1 + $0x450] sm:$0xff]
  %v174 = vld [vmem:[%s1 + $0x458] sm:$0xff]
  %v175 = vld [vmem:[%s1 + $0x460] sm:$0xff]
  %v176 = vld [vmem:[%s1 + $0x468] sm:$0xff]
  %v177 = vld [vmem:[%s1 + $0x470] sm:$0xff]
  %v178 = vld [vmem:[%s1 + $0x478] sm:$0xff]
  %v179 = vld [vmem:[%s1 + $0x480] sm:$0xff]
  %v180 = vld [vmem:[%s1 + $0x488] sm:$0xff]
  %v181 = vld [vmem:[%s1 + $0x490] sm:$0xff]
  %v182 = vld [vmem:[%s1 + $0x498] sm:$0xff]
  %v183 = vld [vmem:[%s1 + $0x4a0] sm:$0xff]
  %v184 = vld [vmem:[%s1 + $0x4a8] sm:$0xff]
  %v185 = vld [vmem:[%s1 + $0x4b0] sm:$0xff]
  %v186 = vld [vmem:[%s1 + $0x4b8] sm:$0xff]
  %v187 = vld [vmem:[%s1 + $0x4c0] sm:$0xff]
  %v188 = vld [vmem:[%s1 + $0x4c8] sm:$0xff]
  %v189 = vld [vmem:[%s1 + $0x4d0] sm:$0xff]
  %v190 = vld [vmem:[%s1 + $0x4d8] sm:$0xff]
  %v191 = vld [vmem:[%s1 + $0x4e0] sm:$0xff]
  %v192 = vld [vmem:[%s1 + $0x4e8] sm:$0xff]
  %v193 = vld [vmem:[%s1 + $0x4f0] sm:$0xff]
  %v194 = vld [vmem:[%s1 + $0x4f8] sm:$0xff]
  %v195 = vld [vmem:[%s1 + $0x500] sm:$0xff]
  %v196 = vld [vmem:[%s1 + $0x508] sm:$0xff]
  %v197 = vld [vmem:[%s1 + $0x510] sm:$0xff]
  %v198 = vld [vmem:[%s1 + $0x518] sm:$0xff]
  %v199 = vld [vmem:[%s1 + $0x520] sm:$0xff]
  %v200 = vld [vmem:[%s1 + $0x528] sm:$0xff]
  %v201 = vld [vmem:[%s1 + $0x530] sm:$0xff]
  %v202 = vld [vmem:[%s1 + $0x538] sm:$0xff]
  %v203 = vld [vmem:[%s1 + $0x540] sm:$0xff]
  %v204 = vld [vmem:[%s1 + $0x548] sm:$0xff]
  %v205 = vld [vmem:[%s1 + $0x550] sm:$0xff]
  %v206 = vld [vmem:[%s1 + $0x558] sm:$0xff]
  %v207 = vld [vmem:[%s1 + $0x560] sm:$0xff]
  %v208 = vld [vmem:[%s1 + $0x568] sm:$0xff]
  %v209 = vld [vmem:[%s1 + $0x570] sm:$0xff]
  %v210 = vld [vmem:[%s1 + $0x578] sm:$0xff]
  %v211 = vld [vmem:[%s1 + $0x580] sm:$0xff]
  %v212 = vld [vmem:[%s1 + $0x588] sm:$0xff]
  %v213 = vld [vmem:[%s1 + $0x590] sm:$0xff]
  %v214 = vld [vmem:[%s1 + $0x598] sm:$0xff]
  %v215 = vld [vmem:[%s1 + $0x5a0] sm:$0xff]
  %v216 = vld [vmem:[%s1 + $0x5a8] sm:$0xff]
  %v217 = vld [vmem:[%s1 + $0x5b0] sm:$0xff]
  %v218 = vld [vmem:[%s1 + $0x5b8] sm:$0xff]
  %v219 = vld [vmem:[%s1 + $0x5c0] sm:$0xff]
  %v220 = vld [vmem:[%s1 + $0x5c8] sm:$0xff]
  %v221 = vld [vmem:[%s1 + $0x5d0] sm:$0xff]
  %v222 = vld [vmem:[%s1 + $0x5d8] sm:$0xff]
  %v223 = vld [vmem:[%s1 + $0x5e0] sm:$0xff]
  %v224 = vld [vmem:[%s1 + $0x5e8] sm:$0xff]
  %v225 = vld [vmem:[%s1 + $0x5f0] sm:$0xff]
  %v226 = vld [vmem:[%s1 + $0x5f8] sm:$0xff]
  %v227 = vld [vmem:[%s1 + $0x600] sm:$0xff]
  %v228 = vld [vmem:[%s1 + $0x608] sm:$0xff]
  %v229 = vld [vmem:[%s1 + $0x610] sm:$0xff]
  %v230 = vld [vmem:[%s1 + $0x618] sm:$0xff]
  %v231 = vld [vmem:[%s2] sm:$0xf]
  %v233 = vlaneseq
  %v234 = vshrl.u32 %v233, 7
  %v235 = vsub.s32 0, %v234
  %v236 = vrot.slane %v231, %v235
  %v237 = vlaneseq
  %v238 = vshrl.u32 %v237, 7
  %v239 = vsub.s32 1, %v238
  %v240 = vrot.slane %v231, %v239
  %v241 = vlaneseq
  %v242 = vshrl.u32 %v241, 7
  %v243 = vsub.s32 2, %v242
  %v244 = vrot.slane %v231, %v243
  %v245 = vlaneseq
  %v246 = vshrl.u32 %v245, 7
  %v247 = vsub.s32 3, %v246
  %v248 = vrot.slane %v231, %v247
  %v261 = vunpack.c.l.b16 %v27
  %v262 = vunpack.c.h.b16 %v27
  %v263 = vunpack.c.l.b16 %v28
  %v264 = vunpack.c.h.b16 %v28
  %v265 = vunpack.c.l.b16 %v29
  %v266 = vunpack.c.h.b16 %v29
  %v267 = vunpack.c.l.b16 %v30
  %v268 = vunpack.c.l.b16 %v31
  %v269 = vunpack.c.h.b16 %v31
  %v270 = vunpack.c.l.b16 %v32
  %v271 = vunpack.c.h.b16 %v32
  %v272 = vunpack.c.l.b16 %v33
  %v273 = vunpack.c.h.b16 %v33
  %v274 = vunpack.c.l.b16 %v34
  %v275 = vpack.c.b16 %v268, %v261
  %v276 = vpack.c.b16 %v269, %v262
  %v277 = vpack.c.b16 %v270, %v263
  %v278 = vpack.c.b16 %v271, %v264
  %v279 = vpack.c.b16 %v272, %v265
  %v280 = vpack.c.b16 %v273, %v266
  %v281 = vpack.c.b16 %v274, %v267
  %v484 = vunpack.c.l.b16 %v35
  %v485 = vunpack.c.h.b16 %v35
  %v486 = vunpack.c.l.b16 %v36
  %v487 = vunpack.c.h.b16 %v36
  %v488 = vunpack.c.l.b16 %v37
  %v489 = vunpack.c.h.b16 %v37
  %v490 = vunpack.c.l.b16 %v38
  %v491 = vunpack.c.h.b16 %v38
  %v492 = vunpack.c.l.b16 %v39
  %v493 = vunpack.c.h.b16 %v39
  %v494 = vunpack.c.l.b16 %v40
  %v495 = vunpack.c.h.b16 %v40
  %v496 = vunpack.c.l.b16 %v41
  %v497 = vunpack.c.h.b16 %v41
  %v498 = vunpack.c.l.b16 %v42
  %v499 = vunpack.c.h.b16 %v42
  %v500 = vunpack.c.l.b16 %v43
  %v501 = vunpack.c.h.b16 %v43
  %v502 = vunpack.c.l.b16 %v44
  %v503 = vunpack.c.h.b16 %v44
  %v504 = vunpack.c.l.b16 %v45
  %v505 = vunpack.c.h.b16 %v45
  %v506 = vunpack.c.l.b16 %v46
  %v507 = vunpack.c.h.b16 %v46
  %v508 = vunpack.c.l.b16 %v47
  %v509 = vunpack.c.h.b16 %v47
  %v510 = vunpack.c.l.b16 %v48
  %v511 = vunpack.c.h.b16 %v48
  %v512 = vunpack.c.l.b16 %v49
  %v513 = vunpack.c.h.b16 %v49
  %v514 = vunpack.c.l.b16 %v50
  %v515 = vunpack.c.h.b16 %v50
  %v516 = vunpack.c.l.b16 %v51
  %v517 = vunpack.c.h.b16 %v51
  %v518 = vunpack.c.l.b16 %v52
  %v519 = vunpack.c.h.b16 %v52
  %v520 = vunpack.c.l.b16 %v53
  %v521 = vunpack.c.h.b16 %v53
  %v522 = vunpack.c.l.b16 %v54
  %v523 = vunpack.c.h.b16 %v54
  %v524 = vunpack.c.l.b16 %v55
  %v525 = vunpack.c.h.b16 %v55
  %v526 = vunpack.c.l.b16 %v56
  %v527 = vunpack.c.h.b16 %v56
  %v528 = vunpack.c.l.b16 %v57
  %v529 = vunpack.c.h.b16 %v57
  %v530 = vunpack.c.l.b16 %v58
  %v531 = vunpack.c.h.b16 %v58
  %v532 = vunpack.c.l.b16 %v59
  %v533 = vunpack.c.h.b16 %v59
  %v534 = vunpack.c.l.b16 %v60
  %v535 = vunpack.c.h.b16 %v60
  %v536 = vunpack.c.l.b16 %v61
  %v537 = vunpack.c.h.b16 %v61
  %v538 = vunpack.c.l.b16 %v62
  %v539 = vunpack.c.h.b16 %v62
  %v540 = vunpack.c.l.b16 %v63
  %v541 = vunpack.c.h.b16 %v63
  %v542 = vunpack.c.l.b16 %v64
  %v543 = vunpack.c.h.b16 %v64
  %v544 = vunpack.c.l.b16 %v65
  %v545 = vunpack.c.h.b16 %v65
  %v546 = vunpack.c.l.b16 %v66
  %v547 = vunpack.c.h.b16 %v66
  %v548 = vunpack.c.l.b16 %v67
  %v549 = vunpack.c.h.b16 %v67
  %v550 = vunpack.c.l.b16 %v68
  %v551 = vunpack.c.h.b16 %v68
  %v552 = vunpack.c.l.b16 %v69
  %v553 = vunpack.c.h.b16 %v69
  %v554 = vunpack.c.l.b16 %v70
  %v555 = vunpack.c.h.b16 %v70
  %v556 = vunpack.c.l.b16 %v71
  %v557 = vunpack.c.h.b16 %v71
  %v558 = vunpack.c.l.b16 %v72
  %v559 = vunpack.c.h.b16 %v72
  %v560 = vunpack.c.l.b16 %v73
  %v561 = vunpack.c.h.b16 %v73
  %v562 = vunpack.c.l.b16 %v74
  %v563 = vunpack.c.h.b16 %v74
  %v564 = vunpack.c.l.b16 %v75
  %v565 = vunpack.c.h.b16 %v75
  %v566 = vunpack.c.l.b16 %v76
  %v567 = vunpack.c.h.b16 %v76
  %v568 = vunpack.c.l.b16 %v77
  %v569 = vunpack.c.h.b16 %v77
  %v570 = vunpack.c.l.b16 %v78
  %v571 = vunpack.c.h.b16 %v78
  %v572 = vunpack.c.l.b16 %v79
  %v573 = vunpack.c.h.b16 %v79
  %v574 = vunpack.c.l.b16 %v80
  %v575 = vunpack.c.h.b16 %v80
  %v576 = vunpack.c.l.b16 %v81
  %v577 = vunpack.c.h.b16 %v81
  %v578 = vunpack.c.l.b16 %v82
  %v579 = vunpack.c.h.b16 %v82
  %v580 = vunpack.c.l.b16 %v83
  %v581 = vunpack.c.h.b16 %v83
  %v582 = vunpack.c.l.b16 %v84
  %v583 = vunpack.c.h.b16 %v84
  %v584 = vunpack.c.l.b16 %v85
  %v585 = vunpack.c.h.b16 %v85
  %v586 = vunpack.c.l.b16 %v86
  %v587 = vunpack.c.h.b16 %v86
  %v588 = vunpack.c.l.b16 %v87
  %v589 = vunpack.c.h.b16 %v87
  %v590 = vunpack.c.l.b16 %v88
  %v591 = vunpack.c.h.b16 %v88
  %v592 = vunpack.c.l.b16 %v89
  %v593 = vunpack.c.h.b16 %v89
  %v594 = vunpack.c.l.b16 %v90
  %v595 = vunpack.c.h.b16 %v90
  %v596 = vunpack.c.l.b16 %v91
  %v597 = vunpack.c.h.b16 %v91
  %v598 = vunpack.c.l.b16 %v92
  %v599 = vunpack.c.h.b16 %v92
  %v600 = vunpack.c.l.b16 %v93
  %v601 = vunpack.c.h.b16 %v93
  %v602 = vunpack.c.l.b16 %v94
  %v603 = vunpack.c.h.b16 %v94
  %v604 = vunpack.c.l.b16 %v95
  %v605 = vunpack.c.h.b16 %v95
  %v606 = vunpack.c.l.b16 %v96
  %v607 = vunpack.c.h.b16 %v96
  %v608 = vunpack.c.l.b16 %v97
  %v609 = vunpack.c.h.b16 %v97
  %v610 = vunpack.c.l.b16 %v98
  %v611 = vunpack.c.h.b16 %v98
  %v612 = vunpack.c.l.b16 %v99
  %v613 = vunpack.c.h.b16 %v99
  %v614 = vunpack.c.l.b16 %v100
  %v615 = vunpack.c.h.b16 %v100
  %v616 = vunpack.c.l.b16 %v101
  %v617 = vunpack.c.h.b16 %v101
  %v618 = vunpack.c.l.b16 %v102
  %v619 = vunpack.c.h.b16 %v102
  %v620 = vunpack.c.l.b16 %v103
  %v621 = vunpack.c.h.b16 %v103
  %v622 = vunpack.c.l.b16 %v104
  %v623 = vunpack.c.h.b16 %v104
  %v624 = vunpack.c.l.b16 %v105
  %v625 = vunpack.c.h.b16 %v105
  %v626 = vunpack.c.l.b16 %v106
  %v627 = vunpack.c.h.b16 %v106
  %v628 = vunpack.c.l.b16 %v107
  %v629 = vunpack.c.h.b16 %v107
  %v630 = vunpack.c.l.b16 %v108
  %v631 = vunpack.c.h.b16 %v108
  %v632 = vunpack.c.l.b16 %v109
  %v633 = vunpack.c.h.b16 %v109
  %v634 = vunpack.c.l.b16 %v110
  %v635 = vunpack.c.h.b16 %v110
  %v636 = vunpack.c.l.b16 %v111
  %v637 = vunpack.c.h.b16 %v111
  %v638 = vunpack.c.l.b16 %v112
  %v639 = vunpack.c.h.b16 %v112
  %v640 = vunpack.c.l.b16 %v113
  %v641 = vunpack.c.h.b16 %v113
  %v642 = vunpack.c.l.b16 %v114
  %v643 = vunpack.c.h.b16 %v114
  %v644 = vunpack.c.l.b16 %v115
  %v645 = vunpack.c.h.b16 %v115
  %v646 = vunpack.c.l.b16 %v116
  %v647 = vunpack.c.h.b16 %v116
  %v648 = vunpack.c.l.b16 %v117
  %v649 = vunpack.c.h.b16 %v117
  %v650 = vunpack.c.l.b16 %v118
  %v651 = vunpack.c.h.b16 %v118
  %v652 = vunpack.c.l.b16 %v119
  %v653 = vunpack.c.h.b16 %v119
  %v654 = vunpack.c.l.b16 %v120
  %v655 = vunpack.c.h.b16 %v120
  %v656 = vunpack.c.l.b16 %v121
  %v657 = vunpack.c.h.b16 %v121
  %v658 = vunpack.c.l.b16 %v122
  %v659 = vunpack.c.h.b16 %v122
  %v660 = vunpack.c.l.b16 %v123
  %v661 = vunpack.c.h.b16 %v123
  %v662 = vunpack.c.l.b16 %v124
  %v663 = vunpack.c.h.b16 %v124
  %v664 = vunpack.c.l.b16 %v125
  %v665 = vunpack.c.h.b16 %v125
  %v666 = vunpack.c.l.b16 %v126
  %v667 = vunpack.c.h.b16 %v126
  %v668 = vunpack.c.l.b16 %v127
  %v669 = vunpack.c.h.b16 %v127
  %v670 = vunpack.c.l.b16 %v128
  %v671 = vunpack.c.h.b16 %v128
  %v672 = vunpack.c.l.b16 %v129
  %v673 = vunpack.c.h.b16 %v129
  %v674 = vunpack.c.l.b16 %v130
  %v675 = vunpack.c.h.b16 %v130
  %v676 = vunpack.c.l.b16 %v131
  %v677 = vunpack.c.h.b16 %v131
  %v678 = vunpack.c.l.b16 %v132
  %v679 = vunpack.c.h.b16 %v132
  %v680 = vunpack.c.l.b16 %v133
  %v681 = vunpack.c.h.b16 %v133
  %v682 = vunpack.c.l.b16 %v134
  %v683 = vunpack.c.h.b16 %v134
  %v684 = vunpack.c.l.b16 %v135
  %v685 = vunpack.c.h.b16 %v135
  %v686 = vunpack.c.l.b16 %v136
  %v687 = vunpack.c.h.b16 %v136
  %v688 = vunpack.c.l.b16 %v137
  %v689 = vunpack.c.h.b16 %v137
  %v690 = vunpack.c.l.b16 %v138
  %v691 = vunpack.c.h.b16 %v138
  %v692 = vunpack.c.l.b16 %v139
  %v693 = vunpack.c.h.b16 %v139
  %v694 = vunpack.c.l.b16 %v140
  %v695 = vunpack.c.h.b16 %v140
  %v696 = vunpack.c.l.b16 %v141
  %v697 = vunpack.c.h.b16 %v141
  %v698 = vunpack.c.l.b16 %v142
  %v699 = vunpack.c.h.b16 %v142
  %v700 = vunpack.c.l.b16 %v143
  %v701 = vunpack.c.h.b16 %v143
  %v702 = vunpack.c.l.b16 %v144
  %v703 = vunpack.c.h.b16 %v144
  %v704 = vunpack.c.l.b16 %v145
  %v705 = vunpack.c.h.b16 %v145
  %v706 = vunpack.c.l.b16 %v146
  %v707 = vunpack.c.h.b16 %v146
  %v708 = vunpack.c.l.b16 %v147
  %v709 = vunpack.c.h.b16 %v147
  %v710 = vunpack.c.l.b16 %v148
  %v711 = vunpack.c.h.b16 %v148
  %v712 = vunpack.c.l.b16 %v149
  %v713 = vunpack.c.h.b16 %v149
  %v714 = vunpack.c.l.b16 %v150
  %v715 = vunpack.c.h.b16 %v150
  %v716 = vunpack.c.l.b16 %v151
  %v717 = vunpack.c.h.b16 %v151
  %v718 = vunpack.c.l.b16 %v152
  %v719 = vunpack.c.h.b16 %v152
  %v720 = vunpack.c.l.b16 %v153
  %v721 = vunpack.c.h.b16 %v153
  %v722 = vunpack.c.l.b16 %v154
  %v723 = vunpack.c.h.b16 %v154
  %v724 = vunpack.c.l.b16 %v155
  %v725 = vunpack.c.h.b16 %v155
  %v726 = vunpack.c.l.b16 %v156
  %v727 = vunpack.c.h.b16 %v156
  %v728 = vunpack.c.l.b16 %v157
  %v729 = vunpack.c.h.b16 %v157
  %v730 = vunpack.c.l.b16 %v158
  %v731 = vunpack.c.h.b16 %v158
  %v732 = vunpack.c.l.b16 %v159
  %v733 = vunpack.c.h.b16 %v159
  %v734 = vunpack.c.l.b16 %v160
  %v735 = vunpack.c.h.b16 %v160
  %v736 = vunpack.c.l.b16 %v161
  %v737 = vunpack.c.h.b16 %v161
  %v738 = vunpack.c.l.b16 %v162
  %v739 = vunpack.c.h.b16 %v162
  %v740 = vunpack.c.l.b16 %v163
  %v741 = vunpack.c.h.b16 %v163
  %v742 = vunpack.c.l.b16 %v164
  %v743 = vunpack.c.h.b16 %v164
  %v744 = vunpack.c.l.b16 %v165
  %v745 = vunpack.c.h.b16 %v165
  %v746 = vunpack.c.l.b16 %v166
  %v747 = vunpack.c.h.b16 %v166
  %v748 = vunpack.c.l.b16 %v167
  %v749 = vunpack.c.h.b16 %v167
  %v750 = vunpack.c.l.b16 %v168
  %v751 = vunpack.c.h.b16 %v168
  %v752 = vunpack.c.l.b16 %v169
  %v753 = vunpack.c.h.b16 %v169
  %v754 = vunpack.c.l.b16 %v170
  %v755 = vunpack.c.h.b16 %v170
  %v756 = vunpack.c.l.b16 %v171
  %v757 = vunpack.c.h.b16 %v171
  %v758 = vunpack.c.l.b16 %v172
  %v759 = vunpack.c.h.b16 %v172
  %v760 = vunpack.c.l.b16 %v173
  %v761 = vunpack.c.h.b16 %v173
  %v762 = vunpack.c.l.b16 %v174
  %v763 = vunpack.c.h.b16 %v174
  %v764 = vunpack.c.l.b16 %v175
  %v765 = vunpack.c.h.b16 %v175
  %v766 = vunpack.c.l.b16 %v176
  %v767 = vunpack.c.h.b16 %v176
  %v768 = vunpack.c.l.b16 %v177
  %v769 = vunpack.c.h.b16 %v177
  %v770 = vunpack.c.l.b16 %v178
  %v771 = vunpack.c.h.b16 %v178
  %v772 = vunpack.c.l.b16 %v179
  %v773 = vunpack.c.h.b16 %v179
  %v774 = vunpack.c.l.b16 %v180
  %v775 = vunpack.c.h.b16 %v180
  %v776 = vunpack.c.l.b16 %v181
  %v777 = vunpack.c.h.b16 %v181
  %v778 = vunpack.c.l.b16 %v182
  %v779 = vunpack.c.h.b16 %v182
  %v780 = vunpack.c.l.b16 %v183
  %v781 = vunpack.c.h.b16 %v183
  %v782 = vunpack.c.l.b16 %v184
  %v783 = vunpack.c.h.b16 %v184
  %v784 = vunpack.c.l.b16 %v185
  %v785 = vunpack.c.h.b16 %v185
  %v786 = vunpack.c.l.b16 %v186
  %v787 = vunpack.c.h.b16 %v186
  %v788 = vunpack.c.l.b16 %v187
  %v789 = vunpack.c.h.b16 %v187
  %v790 = vunpack.c.l.b16 %v188
  %v791 = vunpack.c.h.b16 %v188
  %v792 = vunpack.c.l.b16 %v189
  %v793 = vunpack.c.h.b16 %v189
  %v794 = vunpack.c.l.b16 %v190
  %v795 = vunpack.c.h.b16 %v190
  %v796 = vunpack.c.l.b16 %v191
  %v797 = vunpack.c.h.b16 %v191
  %v798 = vunpack.c.l.b16 %v192
  %v799 = vunpack.c.h.b16 %v192
  %v800 = vunpack.c.l.b16 %v193
  %v801 = vunpack.c.h.b16 %v193
  %v802 = vunpack.c.l.b16 %v194
  %v803 = vunpack.c.h.b16 %v194
  %v804 = vunpack.c.l.b16 %v195
  %v805 = vunpack.c.h.b16 %v195
  %v806 = vunpack.c.l.b16 %v196
  %v807 = vunpack.c.h.b16 %v196
  %v808 = vunpack.c.l.b16 %v197
  %v809 = vunpack.c.h.b16 %v197
  %v810 = vunpack.c.l.b16 %v198
  %v811 = vunpack.c.h.b16 %v198
  %v812 = vunpack.c.l.b16 %v199
  %v813 = vunpack.c.h.b16 %v199
  %v814 = vunpack.c.l.b16 %v200
  %v815 = vunpack.c.h.b16 %v200
  %v816 = vunpack.c.l.b16 %v201
  %v817 = vunpack.c.h.b16 %v201
  %v818 = vunpack.c.l.b16 %v202
  %v819 = vunpack.c.h.b16 %v202
  %v820 = vunpack.c.l.b16 %v203
  %v821 = vunpack.c.h.b16 %v203
  %v822 = vunpack.c.l.b16 %v204
  %v823 = vunpack.c.h.b16 %v204
  %v824 = vunpack.c.l.b16 %v205
  %v825 = vunpack.c.h.b16 %v205
  %v826 = vunpack.c.l.b16 %v206
  %v827 = vunpack.c.h.b16 %v206
  %v828 = vunpack.c.l.b16 %v207
  %v829 = vunpack.c.h.b16 %v207
  %v830 = vunpack.c.l.b16 %v208
  %v831 = vunpack.c.h.b16 %v208
  %v832 = vunpack.c.l.b16 %v209
  %v833 = vunpack.c.h.b16 %v209
  %v834 = vunpack.c.l.b16 %v210
  %v835 = vunpack.c.h.b16 %v210
  %v836 = vunpack.c.l.b16 %v211
  %v837 = vunpack.c.h.b16 %v211
  %v838 = vunpack.c.l.b16 %v212
  %v839 = vunpack.c.h.b16 %v212
  %v840 = vunpack.c.l.b16 %v213
  %v841 = vunpack.c.h.b16 %v213
  %v842 = vunpack.c.l.b16 %v214
  %v843 = vunpack.c.h.b16 %v214
  %v844 = vunpack.c.l.b16 %v215
  %v845 = vunpack.c.h.b16 %v215
  %v846 = vunpack.c.l.b16 %v216
  %v847 = vunpack.c.h.b16 %v216
  %v848 = vunpack.c.l.b16 %v217
  %v849 = vunpack.c.h.b16 %v217
  %v850 = vunpack.c.l.b16 %v218
  %v851 = vunpack.c.h.b16 %v218
  %v852 = vunpack.c.l.b16 %v219
  %v853 = vunpack.c.h.b16 %v219
  %v854 = vunpack.c.l.b16 %v220
  %v855 = vunpack.c.h.b16 %v220
  %v856 = vunpack.c.l.b16 %v221
  %v857 = vunpack.c.h.b16 %v221
  %v858 = vunpack.c.l.b16 %v222
  %v859 = vunpack.c.h.b16 %v222
  %v860 = vunpack.c.l.b16 %v223
  %v861 = vunpack.c.h.b16 %v223
  %v862 = vunpack.c.l.b16 %v224
  %v863 = vunpack.c.h.b16 %v224
  %v864 = vunpack.c.l.b16 %v225
  %v865 = vunpack.c.h.b16 %v225
  %v866 = vunpack.c.l.b16 %v226
  %v867 = vunpack.c.h.b16 %v226
  %v868 = vunpack.c.l.b16 %v227
  %v869 = vunpack.c.h.b16 %v227
  %v870 = vunpack.c.l.b16 %v228
  %v871 = vunpack.c.h.b16 %v228
  %v872 = vunpack.c.l.b16 %v229
  %v873 = vunpack.c.h.b16 %v229
  %v874 = vunpack.c.l.b16 %v230
  %v875 = vunpack.c.h.b16 %v230
  %v876 = vpack.c.b16 %v488, %v484
  %v877 = vpack.c.b16 %v489, %v485
  %v878 = vpack.c.b16 %v490, %v486
  %v879 = vpack.c.b16 %v491, %v487
  %v880 = vpack.c.b16 %v496, %v492
  %v881 = vpack.c.b16 %v497, %v493
  %v882 = vpack.c.b16 %v498, %v494
  %v883 = vpack.c.b16 %v499, %v495
  %v884 = vpack.c.b16 %v504, %v500
  %v885 = vpack.c.b16 %v505, %v501
  %v886 = vpack.c.b16 %v506, %v502
  %v887 = vpack.c.b16 %v507, %v503
  %v888 = vpack.c.b16 %v512, %v508
  %v889 = vpack.c.b16 %v513, %v509
  %v890 = vpack.c.b16 %v514, %v510
  %v891 = vpack.c.b16 %v515, %v511
  %v892 = vpack.c.b16 %v520, %v516
  %v893 = vpack.c.b16 %v521, %v517
  %v894 = vpack.c.b16 %v522, %v518
  %v895 = vpack.c.b16 %v523, %v519
  %v896 = vpack.c.b16 %v528, %v524
  %v897 = vpack.c.b16 %v529, %v525
  %v898 = vpack.c.b16 %v530, %v526
  %v899 = vpack.c.b16 %v531, %v527
  %v900 = vpack.c.b16 %v536, %v532
  %v901 = vpack.c.b16 %v537, %v533
  %v902 = vpack.c.b16 %v538, %v534
  %v903 = vpack.c.b16 %v539, %v535
  %v904 = vpack.c.b16 %v544, %v540
  %v905 = vpack.c.b16 %v545, %v541
  %v906 = vpack.c.b16 %v546, %v542
  %v907 = vpack.c.b16 %v547, %v543
  %v908 = vpack.c.b16 %v552, %v548
  %v909 = vpack.c.b16 %v553, %v549
  %v910 = vpack.c.b16 %v554, %v550
  %v911 = vpack.c.b16 %v555, %v551
  %v912 = vpack.c.b16 %v560, %v556
  %v913 = vpack.c.b16 %v561, %v557
  %v914 = vpack.c.b16 %v562, %v558
  %v915 = vpack.c.b16 %v563, %v559
  %v916 = vpack.c.b16 %v568, %v564
  %v917 = vpack.c.b16 %v569, %v565
  %v918 = vpack.c.b16 %v570, %v566
  %v919 = vpack.c.b16 %v571, %v567
  %v920 = vpack.c.b16 %v576, %v572
  %v921 = vpack.c.b16 %v577, %v573
  %v922 = vpack.c.b16 %v578, %v574
  %v923 = vpack.c.b16 %v579, %v575
  %v924 = vpack.c.b16 %v584, %v580
  %v925 = vpack.c.b16 %v585, %v581
  %v926 = vpack.c.b16 %v586, %v582
  %v927 = vpack.c.b16 %v587, %v583
  %v928 = vpack.c.b16 %v592, %v588
  %v929 = vpack.c.b16 %v593, %v589
  %v930 = vpack.c.b16 %v594, %v590
  %v931 = vpack.c.b16 %v595, %v591
  %v932 = vpack.c.b16 %v600, %v596
  %v933 = vpack.c.b16 %v601, %v597
  %v934 = vpack.c.b16 %v602, %v598
  %v935 = vpack.c.b16 %v603, %v599
  %v936 = vpack.c.b16 %v608, %v604
  %v937 = vpack.c.b16 %v609, %v605
  %v938 = vpack.c.b16 %v610, %v606
  %v939 = vpack.c.b16 %v611, %v607
  %v940 = vpack.c.b16 %v616, %v612
  %v941 = vpack.c.b16 %v617, %v613
  %v942 = vpack.c.b16 %v618, %v614
  %v943 = vpack.c.b16 %v619, %v615
  %v944 = vpack.c.b16 %v624, %v620
  %v945 = vpack.c.b16 %v625, %v621
  %v946 = vpack.c.b16 %v626, %v622
  %v947 = vpack.c.b16 %v627, %v623
  %v948 = vpack.c.b16 %v632, %v628
  %v949 = vpack.c.b16 %v633, %v629
  %v950 = vpack.c.b16 %v634, %v630
  %v951 = vpack.c.b16 %v635, %v631
  %v952 = vpack.c.b16 %v640, %v636
  %v953 = vpack.c.b16 %v641, %v637
  %v954 = vpack.c.b16 %v642, %v638
  %v955 = vpack.c.b16 %v643, %v639
  %v956 = vpack.c.b16 %v648, %v644
  %v957 = vpack.c.b16 %v649, %v645
  %v958 = vpack.c.b16 %v650, %v646
  %v959 = vpack.c.b16 %v651, %v647
  %v960 = vpack.c.b16 %v656, %v652
  %v961 = vpack.c.b16 %v657, %v653
  %v962 = vpack.c.b16 %v658, %v654
  %v963 = vpack.c.b16 %v659, %v655
  %v964 = vpack.c.b16 %v664, %v660
  %v965 = vpack.c.b16 %v665, %v661
  %v966 = vpack.c.b16 %v666, %v662
  %v967 = vpack.c.b16 %v667, %v663
  %v968 = vpack.c.b16 %v672, %v668
  %v969 = vpack.c.b16 %v673, %v669
  %v970 = vpack.c.b16 %v674, %v670
  %v971 = vpack.c.b16 %v675, %v671
  %v972 = vpack.c.b16 %v680, %v676
  %v973 = vpack.c.b16 %v681, %v677
  %v974 = vpack.c.b16 %v682, %v678
  %v975 = vpack.c.b16 %v683, %v679
  %v976 = vpack.c.b16 %v688, %v684
  %v977 = vpack.c.b16 %v689, %v685
  %v978 = vpack.c.b16 %v690, %v686
  %v979 = vpack.c.b16 %v691, %v687
  %v980 = vpack.c.b16 %v696, %v692
  %v981 = vpack.c.b16 %v697, %v693
  %v982 = vpack.c.b16 %v698, %v694
  %v983 = vpack.c.b16 %v699, %v695
  %v984 = vpack.c.b16 %v704, %v700
  %v985 = vpack.c.b16 %v705, %v701
  %v986 = vpack.c.b16 %v706, %v702
  %v987 = vpack.c.b16 %v707, %v703
  %v988 = vpack.c.b16 %v712, %v708
  %v989 = vpack.c.b16 %v713, %v709
  %v990 = vpack.c.b16 %v714, %v710
  %v991 = vpack.c.b16 %v715, %v711
  %v992 = vpack.c.b16 %v720, %v716
  %v993 = vpack.c.b16 %v721, %v717
  %v994 = vpack.c.b16 %v722, %v718
  %v995 = vpack.c.b16 %v723, %v719
  %v996 = vpack.c.b16 %v728, %v724
  %v997 = vpack.c.b16 %v729, %v725
  %v998 = vpack.c.b16 %v730, %v726
  %v999 = vpack.c.b16 %v731, %v727
  %v1000 = vpack.c.b16 %v736, %v732
  %v1001 = vpack.c.b16 %v737, %v733
  %v1002 = vpack.c.b16 %v738, %v734
  %v1003 = vpack.c.b16 %v739, %v735
  %v1004 = vpack.c.b16 %v744, %v740
  %v1005 = vpack.c.b16 %v745, %v741
  %v1006 = vpack.c.b16 %v746, %v742
  %v1007 = vpack.c.b16 %v747, %v743
  %v1008 = vpack.c.b16 %v752, %v748
  %v1009 = vpack.c.b16 %v753, %v749
  %v1010 = vpack.c.b16 %v754, %v750
  %v1011 = vpack.c.b16 %v755, %v751
  %v1012 = vpack.c.b16 %v760, %v756
  %v1013 = vpack.c.b16 %v761, %v757
  %v1014 = vpack.c.b16 %v762, %v758
  %v1015 = vpack.c.b16 %v763, %v759
  %v1016 = vpack.c.b16 %v768, %v764
  %v1017 = vpack.c.b16 %v769, %v765
  %v1018 = vpack.c.b16 %v770, %v766
  %v1019 = vpack.c.b16 %v771, %v767
  %v1020 = vpack.c.b16 %v776, %v772
  %v1021 = vpack.c.b16 %v777, %v773
  %v1022 = vpack.c.b16 %v778, %v774
  %v1023 = vpack.c.b16 %v779, %v775
  %v1024 = vpack.c.b16 %v784, %v780
  %v1025 = vpack.c.b16 %v785, %v781
  %v1026 = vpack.c.b16 %v786, %v782
  %v1027 = vpack.c.b16 %v787, %v783
  %v1028 = vpack.c.b16 %v792, %v788
  %v1029 = vpack.c.b16 %v793, %v789
  %v1030 = vpack.c.b16 %v794, %v790
  %v1031 = vpack.c.b16 %v795, %v791
  %v1032 = vpack.c.b16 %v800, %v796
  %v1033 = vpack.c.b16 %v801, %v797
  %v1034 = vpack.c.b16 %v802, %v798
  %v1035 = vpack.c.b16 %v803, %v799
  %v1036 = vpack.c.b16 %v808, %v804
  %v1037 = vpack.c.b16 %v809, %v805
  %v1038 = vpack.c.b16 %v810, %v806
  %v1039 = vpack.c.b16 %v811, %v807
  %v1040 = vpack.c.b16 %v816, %v812
  %v1041 = vpack.c.b16 %v817, %v813
  %v1042 = vpack.c.b16 %v818, %v814
  %v1043 = vpack.c.b16 %v819, %v815
  %v1044 = vpack.c.b16 %v824, %v820
  %v1045 = vpack.c.b16 %v825, %v821
  %v1046 = vpack.c.b16 %v826, %v822
  %v1047 = vpack.c.b16 %v827, %v823
  %v1048 = vpack.c.b16 %v832, %v828
  %v1049 = vpack.c.b16 %v833, %v829
  %v1050 = vpack.c.b16 %v834, %v830
  %v1051 = vpack.c.b16 %v835, %v831
  %v1052 = vpack.c.b16 %v840, %v836
  %v1053 = vpack.c.b16 %v841, %v837
  %v1054 = vpack.c.b16 %v842, %v838
  %v1055 = vpack.c.b16 %v843, %v839
  %v1056 = vpack.c.b16 %v848, %v844
  %v1057 = vpack.c.b16 %v849, %v845
  %v1058 = vpack.c.b16 %v850, %v846
  %v1059 = vpack.c.b16 %v851, %v847
  %v1060 = vpack.c.b16 %v856, %v852
  %v1061 = vpack.c.b16 %v857, %v853
  %v1062 = vpack.c.b16 %v858, %v854
  %v1063 = vpack.c.b16 %v859, %v855
  %v1064 = vpack.c.b16 %v864, %v860
  %v1065 = vpack.c.b16 %v865, %v861
  %v1066 = vpack.c.b16 %v866, %v862
  %v1067 = vpack.c.b16 %v867, %v863
  %v1068 = vpack.c.b16 %v872, %v868
  %v1069 = vpack.c.b16 %v873, %v869
  %v1070 = vpack.c.b16 %v874, %v870
  %v1071 = vpack.c.b16 %v875, %v871
  %vm1268 = vcmask 130048
  %v1270 = vsel %vm1268, %v281, 0
  %1272 = vmatprep.subr.bf16.mxu0 %v905
  %1273 = vmatpush1.bf16.msra.mxu0 %v904
  %1274 = vmatprep.subr.bf16.mxu0 %v901
  %1275 = vmatpush1.bf16.msra.mxu0 %v900
  %1276 = vmatprep.subr.bf16.mxu0 %v897
  %1277 = vmatpush1.bf16.msra.mxu0 %v896
  %1278 = vmatprep.subr.bf16.mxu0 %v893
  %1279 = vmatpush1.bf16.msra.mxu0 %v892
  %1280 = vmatprep.subr.bf16.mxu0 %v889
  %1281 = vmatpush1.bf16.msra.mxu0 %v888
  %1282 = vmatprep.subr.bf16.mxu0 %v885
  %1283 = vmatpush1.bf16.msra.mxu0 %v884
  %1284 = vmatprep.subr.bf16.mxu0 %v881
  %1285 = vmatpush1.bf16.msra.mxu0 %v880
  %1286 = vmatprep.subr.bf16.mxu0 %v877
  %1287 = vmatpush1.bf16.msra.mxu0 %v876
  %1288 = vmatprep.subr.bf16.mxu0 %v937
  %1289 = vmatpush2.bf16.msra.mxu0 %v936
  %1290 = vmatprep.subr.bf16.mxu0 %v933
  %1291 = vmatpush2.bf16.msra.mxu0 %v932
  %1292 = vmatprep.subr.bf16.mxu0 %v929
  %1293 = vmatpush2.bf16.msra.mxu0 %v928
  %1294 = vmatprep.subr.bf16.mxu0 %v925
  %1295 = vmatpush2.bf16.msra.mxu0 %v924
  %1296 = vmatprep.subr.bf16.mxu0 %v921
  %1297 = vmatpush2.bf16.msra.mxu0 %v920
  %1298 = vmatprep.subr.bf16.mxu0 %v917
  %1299 = vmatpush2.bf16.msra.mxu0 %v916
  %1300 = vmatprep.subr.bf16.mxu0 %v913
  %1301 = vmatpush2.bf16.msra.mxu0 %v912
  %1302 = vmatprep.subr.bf16.mxu0 %v909
  %1303 = vmatpush2.bf16.msra.mxu0 %v908
  %1304 = vmatprep.mubr.bf16.mxu0 %v276
  %1305 = vmatmul.mubr.bf16.gmra.mxu0 %v275
  %v1306 = vpop.f32.mrf.mxu0
  %v1307 = vadd.f32 %v236, %v1306
  %v1308 = vpop.f32.mrf.mxu0
  %v1309 = vadd.f32 %v240, %v1308
  %v1310 = vpop.f32.mrf.mxu0
  %v1311 = vadd.f32 %v236, %v1310
  %v1312 = vpop.f32.mrf.mxu0
  %v1313 = vadd.f32 %v240, %v1312
  %1314 = vdwg.mxu0
  %1315 = vmatprep.subr.bf16.mxu0 %v969
  %1316 = vmatpush1.bf16.msra.mxu0 %v968
  %1317 = vmatprep.subr.bf16.mxu0 %v965
  %1318 = vmatpush1.bf16.msra.mxu0 %v964
  %1319 = vmatprep.subr.bf16.mxu0 %v961
  %1320 = vmatpush1.bf16.msra.mxu0 %v960
  %1321 = vmatprep.subr.bf16.mxu0 %v957
  %1322 = vmatpush1.bf16.msra.mxu0 %v956
  %1323 = vmatprep.subr.bf16.mxu0 %v953
  %1324 = vmatpush1.bf16.msra.mxu0 %v952
  %1325 = vmatprep.subr.bf16.mxu0 %v949
  %1326 = vmatpush1.bf16.msra.mxu0 %v948
  %1327 = vmatprep.subr.bf16.mxu0 %v945
  %1328 = vmatpush1.bf16.msra.mxu0 %v944
  %1329 = vmatprep.subr.bf16.mxu0 %v941
  %1330 = vmatpush1.bf16.msra.mxu0 %v940
  %1331 = vmatprep.subr.bf16.mxu0 %v1001
  %1332 = vmatpush2.bf16.msra.mxu0 %v1000
  %1333 = vmatprep.subr.bf16.mxu0 %v997
  %1334 = vmatpush2.bf16.msra.mxu0 %v996
  %1335 = vmatprep.subr.bf16.mxu0 %v993
  %1336 = vmatpush2.bf16.msra.mxu0 %v992
  %1337 = vmatprep.subr.bf16.mxu0 %v989
  %1338 = vmatpush2.bf16.msra.mxu0 %v988
  %1339 = vmatprep.subr.bf16.mxu0 %v985
  %1340 = vmatpush2.bf16.msra.mxu0 %v984
  %1341 = vmatprep.subr.bf16.mxu0 %v981
  %1342 = vmatpush2.bf16.msra.mxu0 %v980
  %1343 = vmatprep.subr.bf16.mxu0 %v977
  %1344 = vmatpush2.bf16.msra.mxu0 %v976
  %1345 = vmatprep.subr.bf16.mxu0 %v973
  %1346 = vmatpush2.bf16.msra.mxu0 %v972
  %1347 = vmatprep.mubr.bf16.mxu0 %v278
  %1348 = vmatmul.mubr.bf16.gmra.mxu0 %v277
  %v1349 = vpop.f32.mrf.mxu0
  %v1350 = vadd.f32 %v1307, %v1349
  %v1351 = vpop.f32.mrf.mxu0
  %v1352 = vadd.f32 %v1309, %v1351
  %v1353 = vpop.f32.mrf.mxu0
  %v1354 = vadd.f32 %v1311, %v1353
  %v1355 = vpop.f32.mrf.mxu0
  %v1356 = vadd.f32 %v1313, %v1355
  %1357 = vdwg.mxu0
  %1358 = vmatprep.subr.bf16.mxu0 %v1033
  %1359 = vmatpush1.bf16.msra.mxu0 %v1032
  %1360 = vmatprep.subr.bf16.mxu0 %v1029
  %1361 = vmatpush1.bf16.msra.mxu0 %v1028
  %1362 = vmatprep.subr.bf16.mxu0 %v1025
  %1363 = vmatpush1.bf16.msra.mxu0 %v1024
  %1364 = vmatprep.subr.bf16.mxu0 %v1021
  %1365 = vmatpush1.bf16.msra.mxu0 %v1020
  %1366 = vmatprep.subr.bf16.mxu0 %v1017
  %1367 = vmatpush1.bf16.msra.mxu0 %v1016
  %1368 = vmatprep.subr.bf16.mxu0 %v1013
  %1369 = vmatpush1.bf16.msra.mxu0 %v1012
  %1370 = vmatprep.subr.bf16.mxu0 %v1009
  %1371 = vmatpush1.bf16.msra.mxu0 %v1008
  %1372 = vmatprep.subr.bf16.mxu0 %v1005
  %1373 = vmatpush1.bf16.msra.mxu0 %v1004
  %1374 = vmatprep.subr.bf16.mxu0 %v1065
  %1375 = vmatpush2.bf16.msra.mxu0 %v1064
  %1376 = vmatprep.subr.bf16.mxu0 %v1061
  %1377 = vmatpush2.bf16.msra.mxu0 %v1060
  %1378 = vmatprep.subr.bf16.mxu0 %v1057
  %1379 = vmatpush2.bf16.msra.mxu0 %v1056
  %1380 = vmatprep.subr.bf16.mxu0 %v1053
  %1381 = vmatpush2.bf16.msra.mxu0 %v1052
  %1382 = vmatprep.subr.bf16.mxu0 %v1049
  %1383 = vmatpush2.bf16.msra.mxu0 %v1048
  %1384 = vmatprep.subr.bf16.mxu0 %v1045
  %1385 = vmatpush2.bf16.msra.mxu0 %v1044
  %1386 = vmatprep.subr.bf16.mxu0 %v1041
  %1387 = vmatpush2.bf16.msra.mxu0 %v1040
  %1388 = vmatprep.subr.bf16.mxu0 %v1037
  %1389 = vmatpush2.bf16.msra.mxu0 %v1036
  %1390 = vmatprep.mubr.bf16.mxu0 %v280
  %1391 = vmatmul.mubr.bf16.gmra.mxu0 %v279
  %v1392 = vpop.f32.mrf.mxu0
  %v1393 = vadd.f32 %v1350, %v1392
  %v1394 = vpop.f32.mrf.mxu0
  %v1395 = vadd.f32 %v1352, %v1394
  %v1396 = vpop.f32.mrf.mxu0
  %v1397 = vadd.f32 %v1354, %v1396
  %v1398 = vpop.f32.mrf.mxu0
  %v1399 = vadd.f32 %v1356, %v1398
  %1400 = vdwg.mxu0
  %1401 = vmatprep.subr.bf16.mxu0 0
  %1402 = vmatpush1.bf16.msra.mxu0 0
  %1403 = vmatprep.subr.bf16.mxu0 0
  %1404 = vmatpush1.bf16.msra.mxu0 0
  %1405 = vmatprep.subr.bf16.mxu0 0
  %1406 = vmatpush1.bf16.msra.mxu0 0
  %1407 = vmatprep.subr.bf16.mxu0 0
  %1408 = vmatpush1.bf16.msra.mxu0 0
  %1409 = vmatprep.subr.bf16.mxu0 0
  %1410 = vmatpush1.bf16.msra.mxu0 0
  %1411 = vmatprep.subr.bf16.mxu0 0
  %1412 = vmatpush1.bf16.msra.mxu0 0
  %1413 = vmatprep.subr.bf16.mxu0 0
  %1414 = vmatpush1.bf16.msra.mxu0 0
  %1415 = vmatprep.subr.bf16.mxu0 %v1069
  %1416 = vmatpush1.bf16.msra.mxu0 %v1068
  %1417 = vmatprep.subr.bf16.mxu0 0
  %1418 = vmatpush2.bf16.msra.mxu0 0
  %1419 = vmatprep.subr.bf16.mxu0 0
  %1420 = vmatpush2.bf16.msra.mxu0 0
  %1421 = vmatprep.subr.bf16.mxu0 0
  %1422 = vmatpush2.bf16.msra.mxu0 0
  %1423 = vmatprep.subr.bf16.mxu0 0
  %1424 = vmatpush2.bf16.msra.mxu0 0
  %1425 = vmatprep.subr.bf16.mxu0 0
  %1426 = vmatpush2.bf16.msra.mxu0 0
  %1427 = vmatprep.subr.bf16.mxu0 0
  %1428 = vmatpush2.bf16.msra.mxu0 0
  %1429 = vmatprep.subr.bf16.mxu0 0
  %1430 = vmatpush2.bf16.msra.mxu0 0
  %1431 = vmatprep.subr.bf16.mxu0 0
  %1432 = vmatpush2.bf16.msra.mxu0 0
  %1433 = vmatprep.mubr.bf16.mxu0 0
  %1434 = vmatmul.mubr.bf16.gmra.mxu0 %v1270
  %v1435 = vpop.f32.mrf.mxu0
  %v1436 = vadd.f32 %v1393, %v1435
  %v1437 = vpop.f32.mrf.mxu0
  %v1438 = vadd.f32 %v1395, %v1437
  %v1439 = vpop.f32.mrf.mxu0
  %v1440 = vadd.f32 %v1397, %v1439
  %v1441 = vpop.f32.mrf.mxu0
  %v1442 = vadd.f32 %v1399, %v1441
  %1443 = vdwg.mxu0
  %1444 = vmatprep.subr.bf16.mxu0 %v907
  %1445 = vmatpush1.bf16.msra.mxu0 %v906
  %1446 = vmatprep.subr.bf16.mxu0 %v903
  %1447 = vmatpush1.bf16.msra.mxu0 %v902
  %1448 = vmatprep.subr.bf16.mxu0 %v899
  %1449 = vmatpush1.bf16.msra.mxu0 %v898
  %1450 = vmatprep.subr.bf16.mxu0 %v895
  %1451 = vmatpush1.bf16.msra.mxu0 %v894
  %1452 = vmatprep.subr.bf16.mxu0 %v891
  %1453 = vmatpush1.bf16.msra.mxu0 %v890
  %1454 = vmatprep.subr.bf16.mxu0 %v887
  %1455 = vmatpush1.bf16.msra.mxu0 %v886
  %1456 = vmatprep.subr.bf16.mxu0 %v883
  %1457 = vmatpush1.bf16.msra.mxu0 %v882
  %1458 = vmatprep.subr.bf16.mxu0 %v879
  %1459 = vmatpush1.bf16.msra.mxu0 %v878
  %1460 = vmatprep.subr.bf16.mxu0 %v939
  %1461 = vmatpush2.bf16.msra.mxu0 %v938
  %1462 = vmatprep.subr.bf16.mxu0 %v935
  %1463 = vmatpush2.bf16.msra.mxu0 %v934
  %1464 = vmatprep.subr.bf16.mxu0 %v931
  %1465 = vmatpush2.bf16.msra.mxu0 %v930
  %1466 = vmatprep.subr.bf16.mxu0 %v927
  %1467 = vmatpush2.bf16.msra.mxu0 %v926
  %1468 = vmatprep.subr.bf16.mxu0 %v923
  %1469 = vmatpush2.bf16.msra.mxu0 %v922
  %1470 = vmatprep.subr.bf16.mxu0 %v919
  %1471 = vmatpush2.bf16.msra.mxu0 %v918
  %1472 = vmatprep.subr.bf16.mxu0 %v915
  %1473 = vmatpush2.bf16.msra.mxu0 %v914
  %1474 = vmatprep.subr.bf16.mxu0 %v911
  %1475 = vmatpush2.bf16.msra.mxu0 %v910
  %1476 = vmatprep.mubr.bf16.mxu0 %v276
  %1477 = vmatmul.mubr.bf16.gmra.mxu0 %v275
  %v1478 = vpop.f32.mrf.mxu0
  %v1479 = vadd.f32 %v244, %v1478
  %v1480 = vpop.f32.mrf.mxu0
  %v1481 = vadd.f32 %v248, %v1480
  %v1482 = vpop.f32.mrf.mxu0
  %v1483 = vadd.f32 %v244, %v1482
  %v1484 = vpop.f32.mrf.mxu0
  %v1485 = vadd.f32 %v248, %v1484
  %1486 = vdwg.mxu0
  %1487 = vmatprep.subr.bf16.mxu0 %v971
  %1488 = vmatpush1.bf16.msra.mxu0 %v970
  %1489 = vmatprep.subr.bf16.mxu0 %v967
  %1490 = vmatpush1.bf16.msra.mxu0 %v966
  %1491 = vmatprep.subr.bf16.mxu0 %v963
  %1492 = vmatpush1.bf16.msra.mxu0 %v962
  %1493 = vmatprep.subr.bf16.mxu0 %v959
  %1494 = vmatpush1.bf16.msra.mxu0 %v958
  %1495 = vmatprep.subr.bf16.mxu0 %v955
  %1496 = vmatpush1.bf16.msra.mxu0 %v954
  %1497 = vmatprep.subr.bf16.mxu0 %v951
  %1498 = vmatpush1.bf16.msra.mxu0 %v950
  %1499 = vmatprep.subr.bf16.mxu0 %v947
  %1500 = vmatpush1.bf16.msra.mxu0 %v946
  %1501 = vmatprep.subr.bf16.mxu0 %v943
  %1502 = vmatpush1.bf16.msra.mxu0 %v942
  %1503 = vmatprep.subr.bf16.mxu0 %v1003
  %1504 = vmatpush2.bf16.msra.mxu0 %v1002
  %1505 = vmatprep.subr.bf16.mxu0 %v999
  %1506 = vmatpush2.bf16.msra.mxu0 %v998
  %1507 = vmatprep.subr.bf16.mxu0 %v995
  %1508 = vmatpush2.bf16.msra.mxu0 %v994
  %1509 = vmatprep.subr.bf16.mxu0 %v991
  %1510 = vmatpush2.bf16.msra.mxu0 %v990
  %1511 = vmatprep.subr.bf16.mxu0 %v987
  %1512 = vmatpush2.bf16.msra.mxu0 %v986
  %1513 = vmatprep.subr.bf16.mxu0 %v983
  %1514 = vmatpush2.bf16.msra.mxu0 %v982
  %1515 = vmatprep.subr.bf16.mxu0 %v979
  %1516 = vmatpush2.bf16.msra.mxu0 %v978
  %1517 = vmatprep.subr.bf16.mxu0 %v975
  %1518 = vmatpush2.bf16.msra.mxu0 %v974
  %1519 = vmatprep.mubr.bf16.mxu0 %v278
  %1520 = vmatmul.mubr.bf16.gmra.mxu0 %v277
  %v1521 = vpop.f32.mrf.mxu0
  %v1522 = vadd.f32 %v1479, %v1521
  %v1523 = vpop.f32.mrf.mxu0
  %v1524 = vadd.f32 %v1481, %v1523
  %v1525 = vpop.f32.mrf.mxu0
  %v1526 = vadd.f32 %v1483, %v1525
  %v1527 = vpop.f32.mrf.mxu0
  %v1528 = vadd.f32 %v1485, %v1527
  %1529 = vdwg.mxu0
  %1530 = vmatprep.subr.bf16.mxu0 %v1035
  %1531 = vmatpush1.bf16.msra.mxu0 %v1034
  %1532 = vmatprep.subr.bf16.mxu0 %v1031
  %1533 = vmatpush1.bf16.msra.mxu0 %v1030
  %1534 = vmatprep.subr.bf16.mxu0 %v1027
  %1535 = vmatpush1.bf16.msra.mxu0 %v1026
  %1536 = vmatprep.subr.bf16.mxu0 %v1023
  %1537 = vmatpush1.bf16.msra.mxu0 %v1022
  %1538 = vmatprep.subr.bf16.mxu0 %v1019
  %1539 = vmatpush1.bf16.msra.mxu0 %v1018
  %1540 = vmatprep.subr.bf16.mxu0 %v1015
  %1541 = vmatpush1.bf16.msra.mxu0 %v1014
  %1542 = vmatprep.subr.bf16.mxu0 %v1011
  %1543 = vmatpush1.bf16.msra.mxu0 %v1010
  %1544 = vmatprep.subr.bf16.mxu0 %v1007
  %1545 = vmatpush1.bf16.msra.mxu0 %v1006
  %1546 = vmatprep.subr.bf16.mxu0 %v1067
  %1547 = vmatpush2.bf16.msra.mxu0 %v1066
  %1548 = vmatprep.subr.bf16.mxu0 %v1063
  %1549 = vmatpush2.bf16.msra.mxu0 %v1062
  %1550 = vmatprep.subr.bf16.mxu0 %v1059
  %1551 = vmatpush2.bf16.msra.mxu0 %v1058
  %1552 = vmatprep.subr.bf16.mxu0 %v1055
  %1553 = vmatpush2.bf16.msra.mxu0 %v1054
  %1554 = vmatprep.subr.bf16.mxu0 %v1051
  %1555 = vmatpush2.bf16.msra.mxu0 %v1050
  %1556 = vmatprep.subr.bf16.mxu0 %v1047
  %1557 = vmatpush2.bf16.msra.mxu0 %v1046
  %1558 = vmatprep.subr.bf16.mxu0 %v1043
  %1559 = vmatpush2.bf16.msra.mxu0 %v1042
  %1560 = vmatprep.subr.bf16.mxu0 %v1039
  %1561 = vmatpush2.bf16.msra.mxu0 %v1038
  %1562 = vmatprep.mubr.bf16.mxu0 %v280
  %1563 = vmatmul.mubr.bf16.gmra.mxu0 %v279
  %v1564 = vpop.f32.mrf.mxu0
  %v1565 = vadd.f32 %v1522, %v1564
  %v1566 = vpop.f32.mrf.mxu0
  %v1567 = vadd.f32 %v1524, %v1566
  %v1568 = vpop.f32.mrf.mxu0
  %v1569 = vadd.f32 %v1526, %v1568
  %v1570 = vpop.f32.mrf.mxu0
  %v1571 = vadd.f32 %v1528, %v1570
  %1572 = vdwg.mxu0
  %1573 = vmatprep.subr.bf16.mxu0 0
  %1574 = vmatpush1.bf16.msra.mxu0 0
  %1575 = vmatprep.subr.bf16.mxu0 0
  %1576 = vmatpush1.bf16.msra.mxu0 0
  %1577 = vmatprep.subr.bf16.mxu0 0
  %1578 = vmatpush1.bf16.msra.mxu0 0
  %1579 = vmatprep.subr.bf16.mxu0 0
  %1580 = vmatpush1.bf16.msra.mxu0 0
  %1581 = vmatprep.subr.bf16.mxu0 0
  %1582 = vmatpush1.bf16.msra.mxu0 0
  %1583 = vmatprep.subr.bf16.mxu0 0
  %1584 = vmatpush1.bf16.msra.mxu0 0
  %1585 = vmatprep.subr.bf16.mxu0 0
  %1586 = vmatpush1.bf16.msra.mxu0 0
  %1587 = vmatprep.subr.bf16.mxu0 %v1071
  %1588 = vmatpush1.bf16.msra.mxu0 %v1070
  %1589 = vmatprep.subr.bf16.mxu0 0
  %1590 = vmatpush2.bf16.msra.mxu0 0
  %1591 = vmatprep.subr.bf16.mxu0 0
  %1592 = vmatpush2.bf16.msra.mxu0 0
  %1593 = vmatprep.subr.bf16.mxu0 0
  %1594 = vmatpush2.bf16.msra.mxu0 0
  %1595 = vmatprep.subr.bf16.mxu0 0
  %1596 = vmatpush2.bf16.msra.mxu0 0
  %1597 = vmatprep.subr.bf16.mxu0 0
  %1598 = vmatpush2.bf16.msra.mxu0 0
  %1599 = vmatprep.subr.bf16.mxu0 0
  %1600 = vmatpush2.bf16.msra.mxu0 0
  %1601 = vmatprep.subr.bf16.mxu0 0
  %1602 = vmatpush2.bf16.msra.mxu0 0
  %1603 = vmatprep.subr.bf16.mxu0 0
  %1604 = vmatpush2.bf16.msra.mxu0 0
  %1605 = vmatprep.mubr.bf16.mxu0 0
  %1606 = vmatmul.mubr.bf16.gmra.mxu0 %v1270
  %v1607 = vpop.f32.mrf.mxu0
  %v1608 = vadd.f32 %v1565, %v1607
  %v1609 = vpop.f32.mrf.mxu0
  %v1610 = vadd.f32 %v1567, %v1609
  %v1611 = vpop.f32.mrf.mxu0
  %v1612 = vadd.f32 %v1569, %v1611
  %v1613 = vpop.f32.mrf.mxu0
  %v1614 = vadd.f32 %v1571, %v1613
  %1615 = vdwg.mxu0
  %v1616 = vmax.f32 %v1436, 0.0
  %v1617 = vmax.f32 %v1438, 0.0
  %v1618 = vmax.f32 %v1608, 0.0
  %v1619 = vmax.f32 %v1610, 0.0
  %v1620 = vmax.f32 %v1440, 0.0
  %v1621 = vmax.f32 %v1442, 0.0
  %v1622 = vmax.f32 %v1612, 0.0
  %v1623 = vmax.f32 %v1614, 0.0
  %v1624 = vpack.c.bf16 %v1620, %v1616
  %v1625 = vpack.c.bf16 %v1621, %v1617
  %v1626 = vpack.c.bf16 %v1622, %v1618
  %v1627 = vpack.c.bf16 %v1623, %v1619
  %v1628 = vld [vmem:[%s3] sm:$0xff]
  %v1629 = vld [vmem:[%s3 + $0x8] sm:$0xff]
  %v1630 = vld [vmem:[%s3 + $0x10] sm:$0xff]
  %v1631 = vld [vmem:[%s3 + $0x18] sm:$0xff]
  %v1632 = vld [vmem:[%s3 + $0x20] sm:$0xff]
  %v1633 = vld [vmem:[%s3 + $0x28] sm:$0xff]
  %v1634 = vld [vmem:[%s3 + $0x30] sm:$0xff]
  %v1635 = vld [vmem:[%s3 + $0x38] sm:$0xff]
  %v1636 = vld [vmem:[%s3 + $0x40] sm:$0xff]
  %v1637 = vld [vmem:[%s3 + $0x48] sm:$0xff]
  %v1638 = vld [vmem:[%s3 + $0x50] sm:$0xff]
  %v1639 = vld [vmem:[%s3 + $0x58] sm:$0xff]
  %v1640 = vld [vmem:[%s3 + $0x60] sm:$0xff]
  %v1641 = vld [vmem:[%s3 + $0x68] sm:$0xff]
  %v1642 = vld [vmem:[%s3 + $0x70] sm:$0xff]
  %v1643 = vld [vmem:[%s3 + $0x78] sm:$0xff]
  %v1644 = vld [vmem:[%s3 + $0x80] sm:$0xff]
  %v1645 = vld [vmem:[%s3 + $0x88] sm:$0xff]
  %v1646 = vld [vmem:[%s3 + $0x90] sm:$0xff]
  %v1647 = vld [vmem:[%s3 + $0x98] sm:$0xff]
  %v1648 = vld [vmem:[%s3 + $0xa0] sm:$0xff]
  %v1649 = vld [vmem:[%s3 + $0xa8] sm:$0xff]
  %v1650 = vld [vmem:[%s3 + $0xb0] sm:$0xff]
  %v1651 = vld [vmem:[%s3 + $0xb8] sm:$0xff]
  %v1652 = vld [vmem:[%s3 + $0xc0] sm:$0xff]
  %v1653 = vld [vmem:[%s3 + $0xc8] sm:$0xff]
  %v1654 = vld [vmem:[%s3 + $0xd0] sm:$0xff]
  %v1655 = vld [vmem:[%s3 + $0xd8] sm:$0xff]
  %v1656 = vld [vmem:[%s3 + $0xe0] sm:$0xff]
  %v1657 = vld [vmem:[%s3 + $0xe8] sm:$0xff]
  %v1658 = vld [vmem:[%s3 + $0xf0] sm:$0xff]
  %v1659 = vld [vmem:[%s3 + $0xf8] sm:$0xff]
  %v1660 = vld [vmem:[%s3 + $0x100] sm:$0xff]
  %v1661 = vld [vmem:[%s3 + $0x108] sm:$0xff]
  %v1662 = vld [vmem:[%s3 + $0x110] sm:$0xff]
  %v1663 = vld [vmem:[%s3 + $0x118] sm:$0xff]
  %v1664 = vld [vmem:[%s3 + $0x120] sm:$0xff]
  %v1665 = vld [vmem:[%s3 + $0x128] sm:$0xff]
  %v1666 = vld [vmem:[%s3 + $0x130] sm:$0xff]
  %v1667 = vld [vmem:[%s3 + $0x138] sm:$0xff]
  %v1668 = vld [vmem:[%s3 + $0x140] sm:$0xff]
  %v1669 = vld [vmem:[%s3 + $0x148] sm:$0xff]
  %v1670 = vld [vmem:[%s3 + $0x150] sm:$0xff]
  %v1671 = vld [vmem:[%s3 + $0x158] sm:$0xff]
  %v1672 = vld [vmem:[%s3 + $0x160] sm:$0xff]
  %v1673 = vld [vmem:[%s3 + $0x168] sm:$0xff]
  %v1674 = vld [vmem:[%s3 + $0x170] sm:$0xff]
  %v1675 = vld [vmem:[%s3 + $0x178] sm:$0xff]
  %v1676 = vld [vmem:[%s3 + $0x180] sm:$0xff]
  %v1677 = vld [vmem:[%s3 + $0x188] sm:$0xff]
  %v1678 = vld [vmem:[%s3 + $0x190] sm:$0xff]
  %v1679 = vld [vmem:[%s3 + $0x198] sm:$0xff]
  %v1680 = vld [vmem:[%s3 + $0x1a0] sm:$0xff]
  %v1681 = vld [vmem:[%s3 + $0x1a8] sm:$0xff]
  %v1682 = vld [vmem:[%s3 + $0x1b0] sm:$0xff]
  %v1683 = vld [vmem:[%s3 + $0x1b8] sm:$0xff]
  %v1684 = vld [vmem:[%s3 + $0x1c0] sm:$0xff]
  %v1685 = vld [vmem:[%s3 + $0x1c8] sm:$0xff]
  %v1686 = vld [vmem:[%s3 + $0x1d0] sm:$0xff]
  %v1687 = vld [vmem:[%s3 + $0x1d8] sm:$0xff]
  %v1688 = vld [vmem:[%s3 + $0x1e0] sm:$0xff]
  %v1689 = vld [vmem:[%s3 + $0x1e8] sm:$0xff]
  %v1690 = vld [vmem:[%s3 + $0x1f0] sm:$0xff]
  %v1691 = vld [vmem:[%s3 + $0x1f8] sm:$0xff]
  %v1692 = vld [vmem:[%s3 + $0x200] sm:$0xff]
  %v1693 = vld [vmem:[%s3 + $0x208] sm:$0xff]
  %v1694 = vld [vmem:[%s3 + $0x210] sm:$0xff]
  %v1695 = vld [vmem:[%s3 + $0x218] sm:$0xff]
  %v1696 = vld [vmem:[%s3 + $0x220] sm:$0xff]
  %v1697 = vld [vmem:[%s3 + $0x228] sm:$0xff]
  %v1698 = vld [vmem:[%s3 + $0x230] sm:$0xff]
  %v1699 = vld [vmem:[%s3 + $0x238] sm:$0xff]
  %v1700 = vld [vmem:[%s3 + $0x240] sm:$0xff]
  %v1701 = vld [vmem:[%s3 + $0x248] sm:$0xff]
  %v1702 = vld [vmem:[%s3 + $0x250] sm:$0xff]
  %v1703 = vld [vmem:[%s3 + $0x258] sm:$0xff]
  %v1704 = vld [vmem:[%s3 + $0x260] sm:$0xff]
  %v1705 = vld [vmem:[%s3 + $0x268] sm:$0xff]
  %v1706 = vld [vmem:[%s3 + $0x270] sm:$0xff]
  %v1707 = vld [vmem:[%s3 + $0x278] sm:$0xff]
  %v1708 = vld [vmem:[%s3 + $0x280] sm:$0xff]
  %v1709 = vld [vmem:[%s3 + $0x288] sm:$0xff]
  %v1710 = vld [vmem:[%s3 + $0x290] sm:$0xff]
  %v1711 = vld [vmem:[%s3 + $0x298] sm:$0xff]
  %v1712 = vld [vmem:[%s3 + $0x2a0] sm:$0xff]
  %v1713 = vld [vmem:[%s3 + $0x2a8] sm:$0xff]
  %v1714 = vld [vmem:[%s3 + $0x2b0] sm:$0xff]
  %v1715 = vld [vmem:[%s3 + $0x2b8] sm:$0xff]
  %v1716 = vld [vmem:[%s3 + $0x2c0] sm:$0xff]
  %v1717 = vld [vmem:[%s3 + $0x2c8] sm:$0xff]
  %v1718 = vld [vmem:[%s3 + $0x2d0] sm:$0xff]
  %v1719 = vld [vmem:[%s3 + $0x2d8] sm:$0xff]
  %v1720 = vld [vmem:[%s3 + $0x2e0] sm:$0xff]
  %v1721 = vld [vmem:[%s3 + $0x2e8] sm:$0xff]
  %v1722 = vld [vmem:[%s3 + $0x2f0] sm:$0xff]
  %v1723 = vld [vmem:[%s3 + $0x2f8] sm:$0xff]
  %v1724 = vld [vmem:[%s3 + $0x300] sm:$0xff]
  %v1725 = vld [vmem:[%s3 + $0x308] sm:$0xff]
  %v1726 = vld [vmem:[%s3 + $0x310] sm:$0xff]
  %v1727 = vld [vmem:[%s3 + $0x318] sm:$0xff]
  %v1728 = vld [vmem:[%s3 + $0x320] sm:$0xff]
  %v1729 = vld [vmem:[%s3 + $0x328] sm:$0xff]
  %v1730 = vld [vmem:[%s3 + $0x330] sm:$0xff]
  %v1731 = vld [vmem:[%s3 + $0x338] sm:$0xff]
  %v1732 = vld [vmem:[%s3 + $0x340] sm:$0xff]
  %v1733 = vld [vmem:[%s3 + $0x348] sm:$0xff]
  %v1734 = vld [vmem:[%s3 + $0x350] sm:$0xff]
  %v1735 = vld [vmem:[%s3 + $0x358] sm:$0xff]
  %v1736 = vld [vmem:[%s3 + $0x360] sm:$0xff]
  %v1737 = vld [vmem:[%s3 + $0x368] sm:$0xff]
  %v1738 = vld [vmem:[%s3 + $0x370] sm:$0xff]
  %v1739 = vld [vmem:[%s3 + $0x378] sm:$0xff]
  %v1740 = vld [vmem:[%s3 + $0x380] sm:$0xff]
  %v1741 = vld [vmem:[%s3 + $0x388] sm:$0xff]
  %v1742 = vld [vmem:[%s3 + $0x390] sm:$0xff]
  %v1743 = vld [vmem:[%s3 + $0x398] sm:$0xff]
  %v1744 = vld [vmem:[%s3 + $0x3a0] sm:$0xff]
  %v1745 = vld [vmem:[%s3 + $0x3a8] sm:$0xff]
  %v1746 = vld [vmem:[%s3 + $0x3b0] sm:$0xff]
  %v1747 = vld [vmem:[%s3 + $0x3b8] sm:$0xff]
  %v1748 = vld [vmem:[%s3 + $0x3c0] sm:$0xff]
  %v1749 = vld [vmem:[%s3 + $0x3c8] sm:$0xff]
  %v1750 = vld [vmem:[%s3 + $0x3d0] sm:$0xff]
  %v1751 = vld [vmem:[%s3 + $0x3d8] sm:$0xff]
  %v1752 = vld [vmem:[%s3 + $0x3e0] sm:$0xff]
  %v1753 = vld [vmem:[%s3 + $0x3e8] sm:$0xff]
  %v1754 = vld [vmem:[%s3 + $0x3f0] sm:$0xff]
  %v1755 = vld [vmem:[%s3 + $0x3f8] sm:$0xff]
  %v1756 = vld [vmem:[%s4] sm:$0xf]
  %v1758 = vlaneseq
  %v1759 = vshrl.u32 %v1758, 7
  %v1760 = vsub.s32 0, %v1759
  %v1761 = vrot.slane %v1756, %v1760
  %v1762 = vlaneseq
  %v1763 = vshrl.u32 %v1762, 7
  %v1764 = vsub.s32 1, %v1763
  %v1765 = vrot.slane %v1756, %v1764
  %v1766 = vlaneseq
  %v1767 = vshrl.u32 %v1766, 7
  %v1768 = vsub.s32 2, %v1767
  %v1769 = vrot.slane %v1756, %v1768
  %v1770 = vlaneseq
  %v1771 = vshrl.u32 %v1770, 7
  %v1772 = vsub.s32 3, %v1771
  %v1773 = vrot.slane %v1756, %v1772
  %v1906 = vunpack.c.l.b16 %v1628
  %v1907 = vunpack.c.h.b16 %v1628
  %v1908 = vunpack.c.l.b16 %v1629
  %v1909 = vunpack.c.h.b16 %v1629
  %v1910 = vunpack.c.l.b16 %v1630
  %v1911 = vunpack.c.h.b16 %v1630
  %v1912 = vunpack.c.l.b16 %v1631
  %v1913 = vunpack.c.h.b16 %v1631
  %v1914 = vunpack.c.l.b16 %v1632
  %v1915 = vunpack.c.h.b16 %v1632
  %v1916 = vunpack.c.l.b16 %v1633
  %v1917 = vunpack.c.h.b16 %v1633
  %v1918 = vunpack.c.l.b16 %v1634
  %v1919 = vunpack.c.h.b16 %v1634
  %v1920 = vunpack.c.l.b16 %v1635
  %v1921 = vunpack.c.h.b16 %v1635
  %v1922 = vunpack.c.l.b16 %v1636
  %v1923 = vunpack.c.h.b16 %v1636
  %v1924 = vunpack.c.l.b16 %v1637
  %v1925 = vunpack.c.h.b16 %v1637
  %v1926 = vunpack.c.l.b16 %v1638
  %v1927 = vunpack.c.h.b16 %v1638
  %v1928 = vunpack.c.l.b16 %v1639
  %v1929 = vunpack.c.h.b16 %v1639
  %v1930 = vunpack.c.l.b16 %v1640
  %v1931 = vunpack.c.h.b16 %v1640
  %v1932 = vunpack.c.l.b16 %v1641
  %v1933 = vunpack.c.h.b16 %v1641
  %v1934 = vunpack.c.l.b16 %v1642
  %v1935 = vunpack.c.h.b16 %v1642
  %v1936 = vunpack.c.l.b16 %v1643
  %v1937 = vunpack.c.h.b16 %v1643
  %v1938 = vunpack.c.l.b16 %v1644
  %v1939 = vunpack.c.h.b16 %v1644
  %v1940 = vunpack.c.l.b16 %v1645
  %v1941 = vunpack.c.h.b16 %v1645
  %v1942 = vunpack.c.l.b16 %v1646
  %v1943 = vunpack.c.h.b16 %v1646
  %v1944 = vunpack.c.l.b16 %v1647
  %v1945 = vunpack.c.h.b16 %v1647
  %v1946 = vunpack.c.l.b16 %v1648
  %v1947 = vunpack.c.h.b16 %v1648
  %v1948 = vunpack.c.l.b16 %v1649
  %v1949 = vunpack.c.h.b16 %v1649
  %v1950 = vunpack.c.l.b16 %v1650
  %v1951 = vunpack.c.h.b16 %v1650
  %v1952 = vunpack.c.l.b16 %v1651
  %v1953 = vunpack.c.h.b16 %v1651
  %v1954 = vunpack.c.l.b16 %v1652
  %v1955 = vunpack.c.h.b16 %v1652
  %v1956 = vunpack.c.l.b16 %v1653
  %v1957 = vunpack.c.h.b16 %v1653
  %v1958 = vunpack.c.l.b16 %v1654
  %v1959 = vunpack.c.h.b16 %v1654
  %v1960 = vunpack.c.l.b16 %v1655
  %v1961 = vunpack.c.h.b16 %v1655
  %v1962 = vunpack.c.l.b16 %v1656
  %v1963 = vunpack.c.h.b16 %v1656
  %v1964 = vunpack.c.l.b16 %v1657
  %v1965 = vunpack.c.h.b16 %v1657
  %v1966 = vunpack.c.l.b16 %v1658
  %v1967 = vunpack.c.h.b16 %v1658
  %v1968 = vunpack.c.l.b16 %v1659
  %v1969 = vunpack.c.h.b16 %v1659
  %v1970 = vunpack.c.l.b16 %v1660
  %v1971 = vunpack.c.h.b16 %v1660
  %v1972 = vunpack.c.l.b16 %v1661
  %v1973 = vunpack.c.h.b16 %v1661
  %v1974 = vunpack.c.l.b16 %v1662
  %v1975 = vunpack.c.h.b16 %v1662
  %v1976 = vunpack.c.l.b16 %v1663
  %v1977 = vunpack.c.h.b16 %v1663
  %v1978 = vunpack.c.l.b16 %v1664
  %v1979 = vunpack.c.h.b16 %v1664
  %v1980 = vunpack.c.l.b16 %v1665
  %v1981 = vunpack.c.h.b16 %v1665
  %v1982 = vunpack.c.l.b16 %v1666
  %v1983 = vunpack.c.h.b16 %v1666
  %v1984 = vunpack.c.l.b16 %v1667
  %v1985 = vunpack.c.h.b16 %v1667
  %v1986 = vunpack.c.l.b16 %v1668
  %v1987 = vunpack.c.h.b16 %v1668
  %v1988 = vunpack.c.l.b16 %v1669
  %v1989 = vunpack.c.h.b16 %v1669
  %v1990 = vunpack.c.l.b16 %v1670
  %v1991 = vunpack.c.h.b16 %v1670
  %v1992 = vunpack.c.l.b16 %v1671
  %v1993 = vunpack.c.h.b16 %v1671
  %v1994 = vunpack.c.l.b16 %v1672
  %v1995 = vunpack.c.h.b16 %v1672
  %v1996 = vunpack.c.l.b16 %v1673
  %v1997 = vunpack.c.h.b16 %v1673
  %v1998 = vunpack.c.l.b16 %v1674
  %v1999 = vunpack.c.h.b16 %v1674
  %v2000 = vunpack.c.l.b16 %v1675
  %v2001 = vunpack.c.h.b16 %v1675
  %v2002 = vunpack.c.l.b16 %v1676
  %v2003 = vunpack.c.h.b16 %v1676
  %v2004 = vunpack.c.l.b16 %v1677
  %v2005 = vunpack.c.h.b16 %v1677
  %v2006 = vunpack.c.l.b16 %v1678
  %v2007 = vunpack.c.h.b16 %v1678
  %v2008 = vunpack.c.l.b16 %v1679
  %v2009 = vunpack.c.h.b16 %v1679
  %v2010 = vunpack.c.l.b16 %v1680
  %v2011 = vunpack.c.h.b16 %v1680
  %v2012 = vunpack.c.l.b16 %v1681
  %v2013 = vunpack.c.h.b16 %v1681
  %v2014 = vunpack.c.l.b16 %v1682
  %v2015 = vunpack.c.h.b16 %v1682
  %v2016 = vunpack.c.l.b16 %v1683
  %v2017 = vunpack.c.h.b16 %v1683
  %v2018 = vunpack.c.l.b16 %v1684
  %v2019 = vunpack.c.h.b16 %v1684
  %v2020 = vunpack.c.l.b16 %v1685
  %v2021 = vunpack.c.h.b16 %v1685
  %v2022 = vunpack.c.l.b16 %v1686
  %v2023 = vunpack.c.h.b16 %v1686
  %v2024 = vunpack.c.l.b16 %v1687
  %v2025 = vunpack.c.h.b16 %v1687
  %v2026 = vunpack.c.l.b16 %v1688
  %v2027 = vunpack.c.h.b16 %v1688
  %v2028 = vunpack.c.l.b16 %v1689
  %v2029 = vunpack.c.h.b16 %v1689
  %v2030 = vunpack.c.l.b16 %v1690
  %v2031 = vunpack.c.h.b16 %v1690
  %v2032 = vunpack.c.l.b16 %v1691
  %v2033 = vunpack.c.h.b16 %v1691
  %v2034 = vunpack.c.l.b16 %v1692
  %v2035 = vunpack.c.h.b16 %v1692
  %v2036 = vunpack.c.l.b16 %v1693
  %v2037 = vunpack.c.h.b16 %v1693
  %v2038 = vunpack.c.l.b16 %v1694
  %v2039 = vunpack.c.h.b16 %v1694
  %v2040 = vunpack.c.l.b16 %v1695
  %v2041 = vunpack.c.h.b16 %v1695
  %v2042 = vunpack.c.l.b16 %v1696
  %v2043 = vunpack.c.h.b16 %v1696
  %v2044 = vunpack.c.l.b16 %v1697
  %v2045 = vunpack.c.h.b16 %v1697
  %v2046 = vunpack.c.l.b16 %v1698
  %v2047 = vunpack.c.h.b16 %v1698
  %v2048 = vunpack.c.l.b16 %v1699
  %v2049 = vunpack.c.h.b16 %v1699
  %v2050 = vunpack.c.l.b16 %v1700
  %v2051 = vunpack.c.h.b16 %v1700
  %v2052 = vunpack.c.l.b16 %v1701
  %v2053 = vunpack.c.h.b16 %v1701
  %v2054 = vunpack.c.l.b16 %v1702
  %v2055 = vunpack.c.h.b16 %v1702
  %v2056 = vunpack.c.l.b16 %v1703
  %v2057 = vunpack.c.h.b16 %v1703
  %v2058 = vunpack.c.l.b16 %v1704
  %v2059 = vunpack.c.h.b16 %v1704
  %v2060 = vunpack.c.l.b16 %v1705
  %v2061 = vunpack.c.h.b16 %v1705
  %v2062 = vunpack.c.l.b16 %v1706
  %v2063 = vunpack.c.h.b16 %v1706
  %v2064 = vunpack.c.l.b16 %v1707
  %v2065 = vunpack.c.h.b16 %v1707
  %v2066 = vunpack.c.l.b16 %v1708
  %v2067 = vunpack.c.h.b16 %v1708
  %v2068 = vunpack.c.l.b16 %v1709
  %v2069 = vunpack.c.h.b16 %v1709
  %v2070 = vunpack.c.l.b16 %v1710
  %v2071 = vunpack.c.h.b16 %v1710
  %v2072 = vunpack.c.l.b16 %v1711
  %v2073 = vunpack.c.h.b16 %v1711
  %v2074 = vunpack.c.l.b16 %v1712
  %v2075 = vunpack.c.h.b16 %v1712
  %v2076 = vunpack.c.l.b16 %v1713
  %v2077 = vunpack.c.h.b16 %v1713
  %v2078 = vunpack.c.l.b16 %v1714
  %v2079 = vunpack.c.h.b16 %v1714
  %v2080 = vunpack.c.l.b16 %v1715
  %v2081 = vunpack.c.h.b16 %v1715
  %v2082 = vunpack.c.l.b16 %v1716
  %v2083 = vunpack.c.h.b16 %v1716
  %v2084 = vunpack.c.l.b16 %v1717
  %v2085 = vunpack.c.h.b16 %v1717
  %v2086 = vunpack.c.l.b16 %v1718
  %v2087 = vunpack.c.h.b16 %v1718
  %v2088 = vunpack.c.l.b16 %v1719
  %v2089 = vunpack.c.h.b16 %v1719
  %v2090 = vunpack.c.l.b16 %v1720
  %v2091 = vunpack.c.h.b16 %v1720
  %v2092 = vunpack.c.l.b16 %v1721
  %v2093 = vunpack.c.h.b16 %v1721
  %v2094 = vunpack.c.l.b16 %v1722
  %v2095 = vunpack.c.h.b16 %v1722
  %v2096 = vunpack.c.l.b16 %v1723
  %v2097 = vunpack.c.h.b16 %v1723
  %v2098 = vunpack.c.l.b16 %v1724
  %v2099 = vunpack.c.h.b16 %v1724
  %v2100 = vunpack.c.l.b16 %v1725
  %v2101 = vunpack.c.h.b16 %v1725
  %v2102 = vunpack.c.l.b16 %v1726
  %v2103 = vunpack.c.h.b16 %v1726
  %v2104 = vunpack.c.l.b16 %v1727
  %v2105 = vunpack.c.h.b16 %v1727
  %v2106 = vunpack.c.l.b16 %v1728
  %v2107 = vunpack.c.h.b16 %v1728
  %v2108 = vunpack.c.l.b16 %v1729
  %v2109 = vunpack.c.h.b16 %v1729
  %v2110 = vunpack.c.l.b16 %v1730
  %v2111 = vunpack.c.h.b16 %v1730
  %v2112 = vunpack.c.l.b16 %v1731
  %v2113 = vunpack.c.h.b16 %v1731
  %v2114 = vunpack.c.l.b16 %v1732
  %v2115 = vunpack.c.h.b16 %v1732
  %v2116 = vunpack.c.l.b16 %v1733
  %v2117 = vunpack.c.h.b16 %v1733
  %v2118 = vunpack.c.l.b16 %v1734
  %v2119 = vunpack.c.h.b16 %v1734
  %v2120 = vunpack.c.l.b16 %v1735
  %v2121 = vunpack.c.h.b16 %v1735
  %v2122 = vunpack.c.l.b16 %v1736
  %v2123 = vunpack.c.h.b16 %v1736
  %v2124 = vunpack.c.l.b16 %v1737
  %v2125 = vunpack.c.h.b16 %v1737
  %v2126 = vunpack.c.l.b16 %v1738
  %v2127 = vunpack.c.h.b16 %v1738
  %v2128 = vunpack.c.l.b16 %v1739
  %v2129 = vunpack.c.h.b16 %v1739
  %v2130 = vunpack.c.l.b16 %v1740
  %v2131 = vunpack.c.h.b16 %v1740
  %v2132 = vunpack.c.l.b16 %v1741
  %v2133 = vunpack.c.h.b16 %v1741
  %v2134 = vunpack.c.l.b16 %v1742
  %v2135 = vunpack.c.h.b16 %v1742
  %v2136 = vunpack.c.l.b16 %v1743
  %v2137 = vunpack.c.h.b16 %v1743
  %v2138 = vunpack.c.l.b16 %v1744
  %v2139 = vunpack.c.h.b16 %v1744
  %v2140 = vunpack.c.l.b16 %v1745
  %v2141 = vunpack.c.h.b16 %v1745
  %v2142 = vunpack.c.l.b16 %v1746
  %v2143 = vunpack.c.h.b16 %v1746
  %v2144 = vunpack.c.l.b16 %v1747
  %v2145 = vunpack.c.h.b16 %v1747
  %v2146 = vunpack.c.l.b16 %v1748
  %v2147 = vunpack.c.h.b16 %v1748
  %v2148 = vunpack.c.l.b16 %v1749
  %v2149 = vunpack.c.h.b16 %v1749
  %v2150 = vunpack.c.l.b16 %v1750
  %v2151 = vunpack.c.h.b16 %v1750
  %v2152 = vunpack.c.l.b16 %v1751
  %v2153 = vunpack.c.h.b16 %v1751
  %v2154 = vunpack.c.l.b16 %v1752
  %v2155 = vunpack.c.h.b16 %v1752
  %v2156 = vunpack.c.l.b16 %v1753
  %v2157 = vunpack.c.h.b16 %v1753
  %v2158 = vunpack.c.l.b16 %v1754
  %v2159 = vunpack.c.h.b16 %v1754
  %v2160 = vunpack.c.l.b16 %v1755
  %v2161 = vunpack.c.h.b16 %v1755
  %v2162 = vpack.c.b16 %v1910, %v1906
  %v2163 = vpack.c.b16 %v1911, %v1907
  %v2164 = vpack.c.b16 %v1912, %v1908
  %v2165 = vpack.c.b16 %v1913, %v1909
  %v2166 = vpack.c.b16 %v1918, %v1914
  %v2167 = vpack.c.b16 %v1919, %v1915
  %v2168 = vpack.c.b16 %v1920, %v1916
  %v2169 = vpack.c.b16 %v1921, %v1917
  %v2170 = vpack.c.b16 %v1926, %v1922
  %v2171 = vpack.c.b16 %v1927, %v1923
  %v2172 = vpack.c.b16 %v1928, %v1924
  %v2173 = vpack.c.b16 %v1929, %v1925
  %v2174 = vpack.c.b16 %v1934, %v1930
  %v2175 = vpack.c.b16 %v1935, %v1931
  %v2176 = vpack.c.b16 %v1936, %v1932
  %v2177 = vpack.c.b16 %v1937, %v1933
  %v2178 = vpack.c.b16 %v1942, %v1938
  %v2179 = vpack.c.b16 %v1943, %v1939
  %v2180 = vpack.c.b16 %v1944, %v1940
  %v2181 = vpack.c.b16 %v1945, %v1941
  %v2182 = vpack.c.b16 %v1950, %v1946
  %v2183 = vpack.c.b16 %v1951, %v1947
  %v2184 = vpack.c.b16 %v1952, %v1948
  %v2185 = vpack.c.b16 %v1953, %v1949
  %v2186 = vpack.c.b16 %v1958, %v1954
  %v2187 = vpack.c.b16 %v1959, %v1955
  %v2188 = vpack.c.b16 %v1960, %v1956
  %v2189 = vpack.c.b16 %v1961, %v1957
  %v2190 = vpack.c.b16 %v1966, %v1962
  %v2191 = vpack.c.b16 %v1967, %v1963
  %v2192 = vpack.c.b16 %v1968, %v1964
  %v2193 = vpack.c.b16 %v1969, %v1965
  %v2194 = vpack.c.b16 %v1974, %v1970
  %v2195 = vpack.c.b16 %v1975, %v1971
  %v2196 = vpack.c.b16 %v1976, %v1972
  %v2197 = vpack.c.b16 %v1977, %v1973
  %v2198 = vpack.c.b16 %v1982, %v1978
  %v2199 = vpack.c.b16 %v1983, %v1979
  %v2200 = vpack.c.b16 %v1984, %v1980
  %v2201 = vpack.c.b16 %v1985, %v1981
  %v2202 = vpack.c.b16 %v1990, %v1986
  %v2203 = vpack.c.b16 %v1991, %v1987
  %v2204 = vpack.c.b16 %v1992, %v1988
  %v2205 = vpack.c.b16 %v1993, %v1989
  %v2206 = vpack.c.b16 %v1998, %v1994
  %v2207 = vpack.c.b16 %v1999, %v1995
  %v2208 = vpack.c.b16 %v2000, %v1996
  %v2209 = vpack.c.b16 %v2001, %v1997
  %v2210 = vpack.c.b16 %v2006, %v2002
  %v2211 = vpack.c.b16 %v2007, %v2003
  %v2212 = vpack.c.b16 %v2008, %v2004
  %v2213 = vpack.c.b16 %v2009, %v2005
  %v2214 = vpack.c.b16 %v2014, %v2010
  %v2215 = vpack.c.b16 %v2015, %v2011
  %v2216 = vpack.c.b16 %v2016, %v2012
  %v2217 = vpack.c.b16 %v2017, %v2013
  %v2218 = vpack.c.b16 %v2022, %v2018
  %v2219 = vpack.c.b16 %v2023, %v2019
  %v2220 = vpack.c.b16 %v2024, %v2020
  %v2221 = vpack.c.b16 %v2025, %v2021
  %v2222 = vpack.c.b16 %v2030, %v2026
  %v2223 = vpack.c.b16 %v2031, %v2027
  %v2224 = vpack.c.b16 %v2032, %v2028
  %v2225 = vpack.c.b16 %v2033, %v2029
  %v2226 = vpack.c.b16 %v2038, %v2034
  %v2227 = vpack.c.b16 %v2039, %v2035
  %v2228 = vpack.c.b16 %v2040, %v2036
  %v2229 = vpack.c.b16 %v2041, %v2037
  %v2230 = vpack.c.b16 %v2046, %v2042
  %v2231 = vpack.c.b16 %v2047, %v2043
  %v2232 = vpack.c.b16 %v2048, %v2044
  %v2233 = vpack.c.b16 %v2049, %v2045
  %v2234 = vpack.c.b16 %v2054, %v2050
  %v2235 = vpack.c.b16 %v2055, %v2051
  %v2236 = vpack.c.b16 %v2056, %v2052
  %v2237 = vpack.c.b16 %v2057, %v2053
  %v2238 = vpack.c.b16 %v2062, %v2058
  %v2239 = vpack.c.b16 %v2063, %v2059
  %v2240 = vpack.c.b16 %v2064, %v2060
  %v2241 = vpack.c.b16 %v2065, %v2061
  %v2242 = vpack.c.b16 %v2070, %v2066
  %v2243 = vpack.c.b16 %v2071, %v2067
  %v2244 = vpack.c.b16 %v2072, %v2068
  %v2245 = vpack.c.b16 %v2073, %v2069
  %v2246 = vpack.c.b16 %v2078, %v2074
  %v2247 = vpack.c.b16 %v2079, %v2075
  %v2248 = vpack.c.b16 %v2080, %v2076
  %v2249 = vpack.c.b16 %v2081, %v2077
  %v2250 = vpack.c.b16 %v2086, %v2082
  %v2251 = vpack.c.b16 %v2087, %v2083
  %v2252 = vpack.c.b16 %v2088, %v2084
  %v2253 = vpack.c.b16 %v2089, %v2085
  %v2254 = vpack.c.b16 %v2094, %v2090
  %v2255 = vpack.c.b16 %v2095, %v2091
  %v2256 = vpack.c.b16 %v2096, %v2092
  %v2257 = vpack.c.b16 %v2097, %v2093
  %v2258 = vpack.c.b16 %v2102, %v2098
  %v2259 = vpack.c.b16 %v2103, %v2099
  %v2260 = vpack.c.b16 %v2104, %v2100
  %v2261 = vpack.c.b16 %v2105, %v2101
  %v2262 = vpack.c.b16 %v2110, %v2106
  %v2263 = vpack.c.b16 %v2111, %v2107
  %v2264 = vpack.c.b16 %v2112, %v2108
  %v2265 = vpack.c.b16 %v2113, %v2109
  %v2266 = vpack.c.b16 %v2118, %v2114
  %v2267 = vpack.c.b16 %v2119, %v2115
  %v2268 = vpack.c.b16 %v2120, %v2116
  %v2269 = vpack.c.b16 %v2121, %v2117
  %v2270 = vpack.c.b16 %v2126, %v2122
  %v2271 = vpack.c.b16 %v2127, %v2123
  %v2272 = vpack.c.b16 %v2128, %v2124
  %v2273 = vpack.c.b16 %v2129, %v2125
  %v2274 = vpack.c.b16 %v2134, %v2130
  %v2275 = vpack.c.b16 %v2135, %v2131
  %v2276 = vpack.c.b16 %v2136, %v2132
  %v2277 = vpack.c.b16 %v2137, %v2133
  %v2278 = vpack.c.b16 %v2142, %v2138
  %v2279 = vpack.c.b16 %v2143, %v2139
  %v2280 = vpack.c.b16 %v2144, %v2140
  %v2281 = vpack.c.b16 %v2145, %v2141
  %v2282 = vpack.c.b16 %v2150, %v2146
  %v2283 = vpack.c.b16 %v2151, %v2147
  %v2284 = vpack.c.b16 %v2152, %v2148
  %v2285 = vpack.c.b16 %v2153, %v2149
  %v2286 = vpack.c.b16 %v2158, %v2154
  %v2287 = vpack.c.b16 %v2159, %v2155
  %v2288 = vpack.c.b16 %v2160, %v2156
  %v2289 = vpack.c.b16 %v2161, %v2157
  %2418 = vmatprep.subr.bf16.mxu0 %v2191
  %2419 = vmatpush1.bf16.msra.mxu0 %v2190
  %2420 = vmatprep.subr.bf16.mxu0 %v2187
  %2421 = vmatpush1.bf16.msra.mxu0 %v2186
  %2422 = vmatprep.subr.bf16.mxu0 %v2183
  %2423 = vmatpush1.bf16.msra.mxu0 %v2182
  %2424 = vmatprep.subr.bf16.mxu0 %v2179
  %2425 = vmatpush1.bf16.msra.mxu0 %v2178
  %2426 = vmatprep.subr.bf16.mxu0 %v2175
  %2427 = vmatpush1.bf16.msra.mxu0 %v2174
  %2428 = vmatprep.subr.bf16.mxu0 %v2171
  %2429 = vmatpush1.bf16.msra.mxu0 %v2170
  %2430 = vmatprep.subr.bf16.mxu0 %v2167
  %2431 = vmatpush1.bf16.msra.mxu0 %v2166
  %2432 = vmatprep.subr.bf16.mxu0 %v2163
  %2433 = vmatpush1.bf16.msra.mxu0 %v2162
  %2434 = vmatprep.subr.bf16.mxu0 %v2223
  %2435 = vmatpush2.bf16.msra.mxu0 %v2222
  %2436 = vmatprep.subr.bf16.mxu0 %v2219
  %2437 = vmatpush2.bf16.msra.mxu0 %v2218
  %2438 = vmatprep.subr.bf16.mxu0 %v2215
  %2439 = vmatpush2.bf16.msra.mxu0 %v2214
  %2440 = vmatprep.subr.bf16.mxu0 %v2211
  %2441 = vmatpush2.bf16.msra.mxu0 %v2210
  %2442 = vmatprep.subr.bf16.mxu0 %v2207
  %2443 = vmatpush2.bf16.msra.mxu0 %v2206
  %2444 = vmatprep.subr.bf16.mxu0 %v2203
  %2445 = vmatpush2.bf16.msra.mxu0 %v2202
  %2446 = vmatprep.subr.bf16.mxu0 %v2199
  %2447 = vmatpush2.bf16.msra.mxu0 %v2198
  %2448 = vmatprep.subr.bf16.mxu0 %v2195
  %2449 = vmatpush2.bf16.msra.mxu0 %v2194
  %2450 = vmatprep.mubr.bf16.mxu0 %v1625
  %2451 = vmatmul.mubr.bf16.gmra.mxu0 %v1624
  %v2452 = vpop.f32.mrf.mxu0
  %v2453 = vadd.f32 %v1761, %v2452
  %v2454 = vpop.f32.mrf.mxu0
  %v2455 = vadd.f32 %v1765, %v2454
  %v2456 = vpop.f32.mrf.mxu0
  %v2457 = vadd.f32 %v1761, %v2456
  %v2458 = vpop.f32.mrf.mxu0
  %v2459 = vadd.f32 %v1765, %v2458
  %2460 = vdwg.mxu0
  %2461 = vmatprep.subr.bf16.mxu0 %v2255
  %2462 = vmatpush1.bf16.msra.mxu0 %v2254
  %2463 = vmatprep.subr.bf16.mxu0 %v2251
  %2464 = vmatpush1.bf16.msra.mxu0 %v2250
  %2465 = vmatprep.subr.bf16.mxu0 %v2247
  %2466 = vmatpush1.bf16.msra.mxu0 %v2246
  %2467 = vmatprep.subr.bf16.mxu0 %v2243
  %2468 = vmatpush1.bf16.msra.mxu0 %v2242
  %2469 = vmatprep.subr.bf16.mxu0 %v2239
  %2470 = vmatpush1.bf16.msra.mxu0 %v2238
  %2471 = vmatprep.subr.bf16.mxu0 %v2235
  %2472 = vmatpush1.bf16.msra.mxu0 %v2234
  %2473 = vmatprep.subr.bf16.mxu0 %v2231
  %2474 = vmatpush1.bf16.msra.mxu0 %v2230
  %2475 = vmatprep.subr.bf16.mxu0 %v2227
  %2476 = vmatpush1.bf16.msra.mxu0 %v2226
  %2477 = vmatprep.subr.bf16.mxu0 %v2287
  %2478 = vmatpush2.bf16.msra.mxu0 %v2286
  %2479 = vmatprep.subr.bf16.mxu0 %v2283
  %2480 = vmatpush2.bf16.msra.mxu0 %v2282
  %2481 = vmatprep.subr.bf16.mxu0 %v2279
  %2482 = vmatpush2.bf16.msra.mxu0 %v2278
  %2483 = vmatprep.subr.bf16.mxu0 %v2275
  %2484 = vmatpush2.bf16.msra.mxu0 %v2274
  %2485 = vmatprep.subr.bf16.mxu0 %v2271
  %2486 = vmatpush2.bf16.msra.mxu0 %v2270
  %2487 = vmatprep.subr.bf16.mxu0 %v2267
  %2488 = vmatpush2.bf16.msra.mxu0 %v2266
  %2489 = vmatprep.subr.bf16.mxu0 %v2263
  %2490 = vmatpush2.bf16.msra.mxu0 %v2262
  %2491 = vmatprep.subr.bf16.mxu0 %v2259
  %2492 = vmatpush2.bf16.msra.mxu0 %v2258
  %2493 = vmatprep.mubr.bf16.mxu0 %v1627
  %2494 = vmatmul.mubr.bf16.gmra.mxu0 %v1626
  %v2495 = vpop.f32.mrf.mxu0
  %v2496 = vadd.f32 %v2453, %v2495
  %v2497 = vpop.f32.mrf.mxu0
  %v2498 = vadd.f32 %v2455, %v2497
  %v2499 = vpop.f32.mrf.mxu0
  %v2500 = vadd.f32 %v2457, %v2499
  %v2501 = vpop.f32.mrf.mxu0
  %v2502 = vadd.f32 %v2459, %v2501
  %2503 = vdwg.mxu0
  %2504 = vmatprep.subr.bf16.mxu0 %v2193
  %2505 = vmatpush1.bf16.msra.mxu0 %v2192
  %2506 = vmatprep.subr.bf16.mxu0 %v2189
  %2507 = vmatpush1.bf16.msra.mxu0 %v2188
  %2508 = vmatprep.subr.bf16.mxu0 %v2185
  %2509 = vmatpush1.bf16.msra.mxu0 %v2184
  %2510 = vmatprep.subr.bf16.mxu0 %v2181
  %2511 = vmatpush1.bf16.msra.mxu0 %v2180
  %2512 = vmatprep.subr.bf16.mxu0 %v2177
  %2513 = vmatpush1.bf16.msra.mxu0 %v2176
  %2514 = vmatprep.subr.bf16.mxu0 %v2173
  %2515 = vmatpush1.bf16.msra.mxu0 %v2172
  %2516 = vmatprep.subr.bf16.mxu0 %v2169
  %2517 = vmatpush1.bf16.msra.mxu0 %v2168
  %2518 = vmatprep.subr.bf16.mxu0 %v2165
  %2519 = vmatpush1.bf16.msra.mxu0 %v2164
  %2520 = vmatprep.subr.bf16.mxu0 %v2225
  %2521 = vmatpush2.bf16.msra.mxu0 %v2224
  %2522 = vmatprep.subr.bf16.mxu0 %v2221
  %2523 = vmatpush2.bf16.msra.mxu0 %v2220
  %2524 = vmatprep.subr.bf16.mxu0 %v2217
  %2525 = vmatpush2.bf16.msra.mxu0 %v2216
  %2526 = vmatprep.subr.bf16.mxu0 %v2213
  %2527 = vmatpush2.bf16.msra.mxu0 %v2212
  %2528 = vmatprep.subr.bf16.mxu0 %v2209
  %2529 = vmatpush2.bf16.msra.mxu0 %v2208
  %2530 = vmatprep.subr.bf16.mxu0 %v2205
  %2531 = vmatpush2.bf16.msra.mxu0 %v2204
  %2532 = vmatprep.subr.bf16.mxu0 %v2201
  %2533 = vmatpush2.bf16.msra.mxu0 %v2200
  %2534 = vmatprep.subr.bf16.mxu0 %v2197
  %2535 = vmatpush2.bf16.msra.mxu0 %v2196
  %2536 = vmatprep.mubr.bf16.mxu0 %v1625
  %2537 = vmatmul.mubr.bf16.gmra.mxu0 %v1624
  %v2538 = vpop.f32.mrf.mxu0
  %v2539 = vadd.f32 %v1769, %v2538
  %v2540 = vpop.f32.mrf.mxu0
  %v2541 = vadd.f32 %v1773, %v2540
  %v2542 = vpop.f32.mrf.mxu0
  %v2543 = vadd.f32 %v1769, %v2542
  %v2544 = vpop.f32.mrf.mxu0
  %v2545 = vadd.f32 %v1773, %v2544
  %2546 = vdwg.mxu0
  %2547 = vmatprep.subr.bf16.mxu0 %v2257
  %2548 = vmatpush1.bf16.msra.mxu0 %v2256
  %2549 = vmatprep.subr.bf16.mxu0 %v2253
  %2550 = vmatpush1.bf16.msra.mxu0 %v2252
  %2551 = vmatprep.subr.bf16.mxu0 %v2249
  %2552 = vmatpush1.bf16.msra.mxu0 %v2248
  %2553 = vmatprep.subr.bf16.mxu0 %v2245
  %2554 = vmatpush1.bf16.msra.mxu0 %v2244
  %2555 = vmatprep.subr.bf16.mxu0 %v2241
  %2556 = vmatpush1.bf16.msra.mxu0 %v2240
  %2557 = vmatprep.subr.bf16.mxu0 %v2237
  %2558 = vmatpush1.bf16.msra.mxu0 %v2236
  %2559 = vmatprep.subr.bf16.mxu0 %v2233
  %2560 = vmatpush1.bf16.msra.mxu0 %v2232
  %2561 = vmatprep.subr.bf16.mxu0 %v2229
  %2562 = vmatpush1.bf16.msra.mxu0 %v2228
  %2563 = vmatprep.subr.bf16.mxu0 %v2289
  %2564 = vmatpush2.bf16.msra.mxu0 %v2288
  %2565 = vmatprep.subr.bf16.mxu0 %v2285
  %2566 = vmatpush2.bf16.msra.mxu0 %v2284
  %2567 = vmatprep.subr.bf16.mxu0 %v2281
  %2568 = vmatpush2.bf16.msra.mxu0 %v2280
  %2569 = vmatprep.subr.bf16.mxu0 %v2277
  %2570 = vmatpush2.bf16.msra.mxu0 %v2276
  %2571 = vmatprep.subr.bf16.mxu0 %v2273
  %2572 = vmatpush2.bf16.msra.mxu0 %v2272
  %2573 = vmatprep.subr.bf16.mxu0 %v2269
  %2574 = vmatpush2.bf16.msra.mxu0 %v2268
  %2575 = vmatprep.subr.bf16.mxu0 %v2265
  %2576 = vmatpush2.bf16.msra.mxu0 %v2264
  %2577 = vmatprep.subr.bf16.mxu0 %v2261
  %2578 = vmatpush2.bf16.msra.mxu0 %v2260
  %2579 = vmatprep.mubr.bf16.mxu0 %v1627
  %2580 = vmatmul.mubr.bf16.gmra.mxu0 %v1626
  %v2581 = vpop.f32.mrf.mxu0
  %v2582 = vadd.f32 %v2539, %v2581
  %v2583 = vpop.f32.mrf.mxu0
  %v2584 = vadd.f32 %v2541, %v2583
  %v2585 = vpop.f32.mrf.mxu0
  %v2586 = vadd.f32 %v2543, %v2585
  %v2587 = vpop.f32.mrf.mxu0
  %v2588 = vadd.f32 %v2545, %v2587
  %2589 = vdwg.mxu0
  %v2590 = vmax.f32 %v2496, 0.0
  %v2591 = vmax.f32 %v2498, 0.0
  %v2592 = vmax.f32 %v2582, 0.0
  %v2593 = vmax.f32 %v2584, 0.0
  %v2594 = vmax.f32 %v2500, 0.0
  %v2595 = vmax.f32 %v2502, 0.0
  %v2596 = vmax.f32 %v2586, 0.0
  %v2597 = vmax.f32 %v2588, 0.0
  %v2598 = vpack.c.bf16 %v2594, %v2590
  %v2599 = vpack.c.bf16 %v2595, %v2591
  %v2600 = vpack.c.bf16 %v2596, %v2592
  %v2601 = vpack.c.bf16 %v2597, %v2593
  %v2602 = vld [vmem:[%s5] sm:$0xf]
  %v2603 = vld [vmem:[%s5 + $0x4] sm:$0xf]
  %v2604 = vld [vmem:[%s5 + $0x8] sm:$0xf]
  %v2605 = vld [vmem:[%s5 + $0xc] sm:$0xf]
  %v2606 = vld [vmem:[%s5 + $0x10] sm:$0xf]
  %v2607 = vld [vmem:[%s5 + $0x14] sm:$0xf]
  %v2608 = vld [vmem:[%s5 + $0x18] sm:$0xf]
  %v2609 = vld [vmem:[%s5 + $0x1c] sm:$0xf]
  %v2610 = vld [vmem:[%s5 + $0x20] sm:$0xf]
  %v2611 = vld [vmem:[%s5 + $0x24] sm:$0xf]
  %v2612 = vld [vmem:[%s5 + $0x28] sm:$0xf]
  %v2613 = vld [vmem:[%s5 + $0x2c] sm:$0xf]
  %v2614 = vld [vmem:[%s5 + $0x30] sm:$0xf]
  %v2615 = vld [vmem:[%s5 + $0x34] sm:$0xf]
  %v2616 = vld [vmem:[%s5 + $0x38] sm:$0xf]
  %v2617 = vld [vmem:[%s5 + $0x3c] sm:$0xf]
  %v2618 = vld [vmem:[%s5 + $0x40] sm:$0xf]
  %v2619 = vld [vmem:[%s5 + $0x44] sm:$0xf]
  %v2620 = vld [vmem:[%s5 + $0x48] sm:$0xf]
  %v2621 = vld [vmem:[%s5 + $0x4c] sm:$0xf]
  %v2622 = vld [vmem:[%s5 + $0x50] sm:$0xf]
  %v2623 = vld [vmem:[%s5 + $0x54] sm:$0xf]
  %v2624 = vld [vmem:[%s5 + $0x58] sm:$0xf]
  %v2625 = vld [vmem:[%s5 + $0x5c] sm:$0xf]
  %v2626 = vld [vmem:[%s5 + $0x60] sm:$0xf]
  %v2627 = vld [vmem:[%s5 + $0x64] sm:$0xf]
  %v2628 = vld [vmem:[%s5 + $0x68] sm:$0xf]
  %v2629 = vld [vmem:[%s5 + $0x6c] sm:$0xf]
  %v2630 = vld [vmem:[%s5 + $0x70] sm:$0xf]
  %v2631 = vld [vmem:[%s5 + $0x74] sm:$0xf]
  %v2632 = vld [vmem:[%s5 + $0x78] sm:$0xf]
  %v2633 = vld [vmem:[%s5 + $0x7c] sm:$0xf]
  %v2634 = vld [vmem:[%s5 + $0x80] sm:$0xf]
  %v2635 = vld [vmem:[%s5 + $0x84] sm:$0xf]
  %v2636 = vld [vmem:[%s5 + $0x88] sm:$0xf]
  %v2637 = vld [vmem:[%s5 + $0x8c] sm:$0xf]
  %v2638 = vld [vmem:[%s5 + $0x90] sm:$0xf]
  %v2639 = vld [vmem:[%s5 + $0x94] sm:$0xf]
  %v2640 = vld [vmem:[%s5 + $0x98] sm:$0xf]
  %v2641 = vld [vmem:[%s5 + $0x9c] sm:$0xf]
  %v2642 = vld [vmem:[%s5 + $0xa0] sm:$0xf]
  %v2643 = vld [vmem:[%s5 + $0xa4] sm:$0xf]
  %v2644 = vld [vmem:[%s5 + $0xa8] sm:$0xf]
  %v2645 = vld [vmem:[%s5 + $0xac] sm:$0xf]
  %v2646 = vld [vmem:[%s5 + $0xb0] sm:$0xf]
  %v2647 = vld [vmem:[%s5 + $0xb4] sm:$0xf]
  %v2648 = vld [vmem:[%s5 + $0xb8] sm:$0xf]
  %v2649 = vld [vmem:[%s5 + $0xbc] sm:$0xf]
  %v2650 = vld [vmem:[%s5 + $0xc0] sm:$0xf]
  %v2651 = vld [vmem:[%s5 + $0xc4] sm:$0xf]
  %v2652 = vld [vmem:[%s5 + $0xc8] sm:$0xf]
  %v2653 = vld [vmem:[%s5 + $0xcc] sm:$0xf]
  %v2654 = vld [vmem:[%s5 + $0xd0] sm:$0xf]
  %v2655 = vld [vmem:[%s5 + $0xd4] sm:$0xf]
  %v2656 = vld [vmem:[%s5 + $0xd8] sm:$0xf]
  %v2657 = vld [vmem:[%s5 + $0xdc] sm:$0xf]
  %v2658 = vld [vmem:[%s5 + $0xe0] sm:$0xf]
  %v2659 = vld [vmem:[%s5 + $0xe4] sm:$0xf]
  %v2660 = vld [vmem:[%s5 + $0xe8] sm:$0xf]
  %v2661 = vld [vmem:[%s5 + $0xec] sm:$0xf]
  %v2662 = vld [vmem:[%s5 + $0xf0] sm:$0xf]
  %v2663 = vld [vmem:[%s5 + $0xf4] sm:$0xf]
  %v2664 = vld [vmem:[%s5 + $0xf8] sm:$0xf]
  %v2665 = vld [vmem:[%s5 + $0xfc] sm:$0xf]
  %v2666 = vld [vmem:[%s6] sm:$0x1]
  %v2668 = vlaneseq
  %v2669 = vshrl.u32 %v2668, 7
  %v2670 = vsub.s32 0, %v2669
  %v2671 = vrot.slane %v2666, %v2670
  %v2737 = vunpack.c.l.b16 %v2602
  %v2738 = vunpack.c.l.b16 %v2603
  %v2739 = vunpack.c.l.b16 %v2604
  %v2740 = vunpack.c.l.b16 %v2605
  %v2741 = vunpack.c.l.b16 %v2606
  %v2742 = vunpack.c.l.b16 %v2607
  %v2743 = vunpack.c.l.b16 %v2608
  %v2744 = vunpack.c.l.b16 %v2609
  %v2745 = vunpack.c.l.b16 %v2610
  %v2746 = vunpack.c.l.b16 %v2611
  %v2747 = vunpack.c.l.b16 %v2612
  %v2748 = vunpack.c.l.b16 %v2613
  %v2749 = vunpack.c.l.b16 %v2614
  %v2750 = vunpack.c.l.b16 %v2615
  %v2751 = vunpack.c.l.b16 %v2616
  %v2752 = vunpack.c.l.b16 %v2617
  %v2753 = vunpack.c.l.b16 %v2618
  %v2754 = vunpack.c.l.b16 %v2619
  %v2755 = vunpack.c.l.b16 %v2620
  %v2756 = vunpack.c.l.b16 %v2621
  %v2757 = vunpack.c.l.b16 %v2622
  %v2758 = vunpack.c.l.b16 %v2623
  %v2759 = vunpack.c.l.b16 %v2624
  %v2760 = vunpack.c.l.b16 %v2625
  %v2761 = vunpack.c.l.b16 %v2626
  %v2762 = vunpack.c.l.b16 %v2627
  %v2763 = vunpack.c.l.b16 %v2628
  %v2764 = vunpack.c.l.b16 %v2629
  %v2765 = vunpack.c.l.b16 %v2630
  %v2766 = vunpack.c.l.b16 %v2631
  %v2767 = vunpack.c.l.b16 %v2632
  %v2768 = vunpack.c.l.b16 %v2633
  %v2769 = vunpack.c.l.b16 %v2634
  %v2770 = vunpack.c.l.b16 %v2635
  %v2771 = vunpack.c.l.b16 %v2636
  %v2772 = vunpack.c.l.b16 %v2637
  %v2773 = vunpack.c.l.b16 %v2638
  %v2774 = vunpack.c.l.b16 %v2639
  %v2775 = vunpack.c.l.b16 %v2640
  %v2776 = vunpack.c.l.b16 %v2641
  %v2777 = vunpack.c.l.b16 %v2642
  %v2778 = vunpack.c.l.b16 %v2643
  %v2779 = vunpack.c.l.b16 %v2644
  %v2780 = vunpack.c.l.b16 %v2645
  %v2781 = vunpack.c.l.b16 %v2646
  %v2782 = vunpack.c.l.b16 %v2647
  %v2783 = vunpack.c.l.b16 %v2648
  %v2784 = vunpack.c.l.b16 %v2649
  %v2785 = vunpack.c.l.b16 %v2650
  %v2786 = vunpack.c.l.b16 %v2651
  %v2787 = vunpack.c.l.b16 %v2652
  %v2788 = vunpack.c.l.b16 %v2653
  %v2789 = vunpack.c.l.b16 %v2654
  %v2790 = vunpack.c.l.b16 %v2655
  %v2791 = vunpack.c.l.b16 %v2656
  %v2792 = vunpack.c.l.b16 %v2657
  %v2793 = vunpack.c.l.b16 %v2658
  %v2794 = vunpack.c.l.b16 %v2659
  %v2795 = vunpack.c.l.b16 %v2660
  %v2796 = vunpack.c.l.b16 %v2661
  %v2797 = vunpack.c.l.b16 %v2662
  %v2798 = vunpack.c.l.b16 %v2663
  %v2799 = vunpack.c.l.b16 %v2664
  %v2800 = vunpack.c.l.b16 %v2665
  %v2801 = vpack.c.b16 %v2738, %v2737
  %v2802 = vpack.c.b16 %v2740, %v2739
  %v2803 = vpack.c.b16 %v2742, %v2741
  %v2804 = vpack.c.b16 %v2744, %v2743
  %v2805 = vpack.c.b16 %v2746, %v2745
  %v2806 = vpack.c.b16 %v2748, %v2747
  %v2807 = vpack.c.b16 %v2750, %v2749
  %v2808 = vpack.c.b16 %v2752, %v2751
  %v2809 = vpack.c.b16 %v2754, %v2753
  %v2810 = vpack.c.b16 %v2756, %v2755
  %v2811 = vpack.c.b16 %v2758, %v2757
  %v2812 = vpack.c.b16 %v2760, %v2759
  %v2813 = vpack.c.b16 %v2762, %v2761
  %v2814 = vpack.c.b16 %v2764, %v2763
  %v2815 = vpack.c.b16 %v2766, %v2765
  %v2816 = vpack.c.b16 %v2768, %v2767
  %v2817 = vpack.c.b16 %v2770, %v2769
  %v2818 = vpack.c.b16 %v2772, %v2771
  %v2819 = vpack.c.b16 %v2774, %v2773
  %v2820 = vpack.c.b16 %v2776, %v2775
  %v2821 = vpack.c.b16 %v2778, %v2777
  %v2822 = vpack.c.b16 %v2780, %v2779
  %v2823 = vpack.c.b16 %v2782, %v2781
  %v2824 = vpack.c.b16 %v2784, %v2783
  %v2825 = vpack.c.b16 %v2786, %v2785
  %v2826 = vpack.c.b16 %v2788, %v2787
  %v2827 = vpack.c.b16 %v2790, %v2789
  %v2828 = vpack.c.b16 %v2792, %v2791
  %v2829 = vpack.c.b16 %v2794, %v2793
  %v2830 = vpack.c.b16 %v2796, %v2795
  %v2831 = vpack.c.b16 %v2798, %v2797
  %v2832 = vpack.c.b16 %v2800, %v2799
  %2865 = vmatprep.subr.bf16.mxu0 0
  %2866 = vmatpush1.bf16.msra.mxu0 %v2808
  %2867 = vmatprep.subr.bf16.mxu0 0
  %2868 = vmatpush1.bf16.msra.mxu0 %v2807
  %2869 = vmatprep.subr.bf16.mxu0 0
  %2870 = vmatpush1.bf16.msra.mxu0 %v2806
  %2871 = vmatprep.subr.bf16.mxu0 0
  %2872 = vmatpush1.bf16.msra.mxu0 %v2805
  %2873 = vmatprep.subr.bf16.mxu0 0
  %2874 = vmatpush1.bf16.msra.mxu0 %v2804
  %2875 = vmatprep.subr.bf16.mxu0 0
  %2876 = vmatpush1.bf16.msra.mxu0 %v2803
  %2877 = vmatprep.subr.bf16.mxu0 0
  %2878 = vmatpush1.bf16.msra.mxu0 %v2802
  %2879 = vmatprep.subr.bf16.mxu0 0
  %2880 = vmatpush1.bf16.msra.mxu0 %v2801
  %2881 = vmatprep.subr.bf16.mxu0 0
  %2882 = vmatpush2.bf16.msra.mxu0 %v2816
  %2883 = vmatprep.subr.bf16.mxu0 0
  %2884 = vmatpush2.bf16.msra.mxu0 %v2815
  %2885 = vmatprep.subr.bf16.mxu0 0
  %2886 = vmatpush2.bf16.msra.mxu0 %v2814
  %2887 = vmatprep.subr.bf16.mxu0 0
  %2888 = vmatpush2.bf16.msra.mxu0 %v2813
  %2889 = vmatprep.subr.bf16.mxu0 0
  %2890 = vmatpush2.bf16.msra.mxu0 %v2812
  %2891 = vmatprep.subr.bf16.mxu0 0
  %2892 = vmatpush2.bf16.msra.mxu0 %v2811
  %2893 = vmatprep.subr.bf16.mxu0 0
  %2894 = vmatpush2.bf16.msra.mxu0 %v2810
  %2895 = vmatprep.subr.bf16.mxu0 0
  %2896 = vmatpush2.bf16.msra.mxu0 %v2809
  %2897 = vmatprep.mubr.bf16.mxu0 %v2599
  %2898 = vmatmul.mubr.bf16.gmra.mxu0 %v2598
  %v2899 = vpop.f32.mrf.mxu0
  %v2900 = vadd.f32 %v2671, %v2899
  %v2901 = vpop.f32.mrf.mxu0
  %v2902 = vpop.f32.mrf.mxu0
  %v2903 = vadd.f32 %v2671, %v2902
  %v2904 = vpop.f32.mrf.mxu0
  %2905 = vdwg.mxu0
  %2906 = vmatprep.subr.bf16.mxu0 0
  %2907 = vmatpush1.bf16.msra.mxu0 %v2824
  %2908 = vmatprep.subr.bf16.mxu0 0
  %2909 = vmatpush1.bf16.msra.mxu0 %v2823
  %2910 = vmatprep.subr.bf16.mxu0 0
  %2911 = vmatpush1.bf16.msra.mxu0 %v2822
  %2912 = vmatprep.subr.bf16.mxu0 0
  %2913 = vmatpush1.bf16.msra.mxu0 %v2821
  %2914 = vmatprep.subr.bf16.mxu0 0
  %2915 = vmatpush1.bf16.msra.mxu0 %v2820
  %2916 = vmatprep.subr.bf16.mxu0 0
  %2917 = vmatpush1.bf16.msra.mxu0 %v2819
  %2918 = vmatprep.subr.bf16.mxu0 0
  %2919 = vmatpush1.bf16.msra.mxu0 %v2818
  %2920 = vmatprep.subr.bf16.mxu0 0
  %2921 = vmatpush1.bf16.msra.mxu0 %v2817
  %2922 = vmatprep.subr.bf16.mxu0 0
  %2923 = vmatpush2.bf16.msra.mxu0 %v2832
  %2924 = vmatprep.subr.bf16.mxu0 0
  %2925 = vmatpush2.bf16.msra.mxu0 %v2831
  %2926 = vmatprep.subr.bf16.mxu0 0
  %2927 = vmatpush2.bf16.msra.mxu0 %v2830
  %2928 = vmatprep.subr.bf16.mxu0 0
  %2929 = vmatpush2.bf16.msra.mxu0 %v2829
  %2930 = vmatprep.subr.bf16.mxu0 0
  %2931 = vmatpush2.bf16.msra.mxu0 %v2828
  %2932 = vmatprep.subr.bf16.mxu0 0
  %2933 = vmatpush2.bf16.msra.mxu0 %v2827
  %2934 = vmatprep.subr.bf16.mxu0 0
  %2935 = vmatpush2.bf16.msra.mxu0 %v2826
  %2936 = vmatprep.subr.bf16.mxu0 0
  %2937 = vmatpush2.bf16.msra.mxu0 %v2825
  %2938 = vmatprep.mubr.bf16.mxu0 %v2601
  %2939 = vmatmul.mubr.bf16.gmra.mxu0 %v2600
  %v2940 = vpop.f32.mrf.mxu0
  %v2941 = vadd.f32 %v2900, %v2940
  %v2942 = vpop.f32.mrf.mxu0
  %v2943 = vpop.f32.mrf.mxu0
  %v2944 = vadd.f32 %v2903, %v2943
  %v2945 = vpop.f32.mrf.mxu0
  %2946 = vdwg.mxu0
  %v2947 = vmax.f32 %v2941, 0.0
  %v2948 = vmax.f32 %v2944, 0.0
  %2949 = vst [vmem:[%s7] sm:$0xff] %v2947
  %2950 = vst [vmem:[%s7 + $0x8] sm:$0xff] %v2948
  // Predicated region
  $region30: #{neural_network_forward.1} parent=0 // pred_check
    _
  $region31: #{neural_network_forward.1} parent=0 // pred_check_branch
    %2952 = sbr.rel (0) target = $region33
  $region32: #{neural_network_forward.1} parent=0 // pred_region
    _
  $region33: #{neural_network_forward.1} parent=0 // pred_fallthru
    _
  // Predicated region
  $region34: #{neural_network_forward.1} parent=0 // pred_check
    _
  $region35: #{neural_network_forward.1} parent=0 // pred_check_branch
    %2954 = sbr.rel (0) target = $region37
  $region36: #{neural_network_forward.1} parent=0 // pred_region
    _
  $region37: #{neural_network_forward.1} parent=0 // pred_fallthru
    _

</llo_original>
